<compile_context>
chip_gen: v5e
topology: v5e:2x2
jax: 0.10.0
libtpu: 0.0.40
codegen_flags: <defaults>
</compile_context>

<pallas_src>
import jax
import jax.numpy as jnp
from jax import lax
from jax.experimental import pallas as pl
from jax.experimental.pallas import tpu as pltpu


def _round_up(x, m):
    return ((x + m - 1) // m) * m


def lstm_kernel(gx_ref, whh_ref, h_out_ref, c_out_ref):
    """Full LSTM recurrence in one kernel invocation.

    gx_ref   : (T, B, 4*HP) f32   precomputed input gates (x_t @ W_ih^T + b),
                                  per-gate padded to 128-lane tiles
    whh_ref  : (HP, 4*HP)   bf16  hidden->gates weights, pre-transposed + padded
    h_out_ref: (B, HP)      f32   final hidden state (pad lanes stay exactly 0)
    c_out_ref: (B, HP)      f32   final cell state   (pad lanes stay exactly 0)
    """
    T = gx_ref.shape[0]
    B, HP = h_out_ref.shape

    def step(t, carry):
        h, c = carry
        # Recurrent projection on the MXU: bf16 operands, f32 accumulation.
        rec = jnp.dot(h.astype(jnp.bfloat16), whh_ref[...],
                      preferred_element_type=jnp.float32)
        gates = gx_ref[t] + rec                        # (B, 4*HP) f32
        # PyTorch gate order: i, f, g, o.  Each slice is a full 128-lane tile.
        i = jax.nn.sigmoid(gates[:, 0 * HP:1 * HP])
        f = jax.nn.sigmoid(gates[:, 1 * HP:2 * HP])
        g = jnp.tanh(gates[:, 2 * HP:3 * HP])
        o = jax.nn.sigmoid(gates[:, 3 * HP:4 * HP])
        c_new = f * c + i * g
        h_new = o * jnp.tanh(c_new)
        return (h_new, c_new)

    h0 = jnp.zeros((B, HP), jnp.float32)
    c0 = jnp.zeros((B, HP), jnp.float32)
    # Short fixed trip count -> fully unroll for LLO scheduler visibility.
    h, c = lax.fori_loop(0, T, step, (h0, c0), unroll=True)

    # Lane-dense, unconditional stores (also correct for T == 0: zero state).
    h_out_ref[...] = h
    c_out_ref[...] = c


def encoder_forward(x_ids, params):
    """x_ids: (B, T) int32 token ids.  Returns (hidden, cell), each (1, B, H)."""
    emb = params["embedding"].astype(jnp.float32)          # (V, E)
    w_ih = params["w_ih"].astype(jnp.float32)              # (4H, E)  PyTorch layout
    w_hh = params["w_hh"].astype(jnp.float32)              # (4H, H)
    bias = (params["b_ih"] + params["b_hh"]).astype(jnp.float32)  # (4H,)

    B, T = x_ids.shape
    V, E = emb.shape
    H = w_hh.shape[1]
    HP = _round_up(H, 128)   # pad each gate to a full 128-lane tile

    # ---- glue: hoist embedding + input projection out of the recurrence ----
    # Gate table: a single (V,E)x(E,4H) GEMM over the whole vocabulary.
    gate_tbl = emb @ w_ih.T + bias                          # (V, 4H)
    gate_tbl = gate_tbl.reshape(V, 4, H)
    gate_tbl = jnp.zeros((V, 4, HP), jnp.float32).at[:, :, :H].set(gate_tbl)
    gate_tbl = gate_tbl.reshape(V, 4 * HP)
    # Per-token input gates, time-major, gathered directly from the table.
    gx = jnp.take(gate_tbl, x_ids.T, axis=0)                # (T, B, 4*HP)

    # Recurrent weights: pre-transposed, per-gate padded, bf16 for the MXU.
    whh_t = w_hh.T.reshape(H, 4, H)                         # (H, 4, H)
    whh_p = jnp.zeros((HP, 4, HP), jnp.float32).at[:H, :, :H].set(whh_t)
    whh_p = whh_p.reshape(HP, 4 * HP).astype(jnp.bfloat16)  # (HP, 4*HP)

    h_p, c_p = pl.pallas_call(
        lstm_kernel,
        out_shape=(
            jax.ShapeDtypeStruct((B, HP), jnp.float32),
            jax.ShapeDtypeStruct((B, HP), jnp.float32),
        ),
        # Single invocation: whole operands resident in VMEM, no per-step grid,
        # no double-buffering of loop-invariant weights.
        in_specs=[
            pl.BlockSpec(memory_space=pltpu.MemorySpace.VMEM),
            pl.BlockSpec(memory_space=pltpu.MemorySpace.VMEM),
        ],
        out_specs=(
            pl.BlockSpec(memory_space=pltpu.MemorySpace.VMEM),
            pl.BlockSpec(memory_space=pltpu.MemorySpace.VMEM),
        ),
    )(gx, whh_p)
    # TODO(synk): if batch grows, add a leading "parallel" grid axis over B (or
    # core_map over the 2-TC mesh) so both v7x TensorCores get work; the time
    # recurrence itself must stay sequential.

    h = h_p[:, :H]
    c = c_p[:, :H]
    # PyTorch returns (num_layers * num_directions, B, H) = (1, B, H)
    return h[None, :, :], c[None, :, :]


def encoder_reference(x_ids, params, *, bf16_recurrent=False):
    """Pure-JAX reference matching PyTorch LSTM semantics (lax.scan).

    bf16_recurrent=True mirrors the kernel's bf16-weight MXU recurrence (tight
    check); False is the exact f32 PyTorch math (checked at bf16 tolerance).
    """
    emb = params["embedding"].astype(jnp.float32)
    w_ih = params["w_ih"].astype(jnp.float32)
    w_hh = params["w_hh"].astype(jnp.float32)
    b = (params["b_ih"] + params["b_hh"]).astype(jnp.float32)
    B, T = x_ids.shape
    H = w_hh.shape[1]
    x_emb = jnp.take(emb, x_ids, axis=0)                    # (B, T, E)
    x_tm = jnp.transpose(x_emb, (1, 0, 2))                  # (T, B, E)
    whh_t = w_hh.T
    if bf16_recurrent:
        whh_t = whh_t.astype(jnp.bfloat16)

    def step(carry, x_t):
        h, c = carry
        rec = jnp.dot(h.astype(whh_t.dtype), whh_t,
                      preferred_element_type=jnp.float32)
        gates = x_t @ w_ih.T + b + rec
        i = jax.nn.sigmoid(gates[:, 0 * H:1 * H])
        f = jax.nn.sigmoid(gates[:, 1 * H:2 * H])
        g = jnp.tanh(gates[:, 2 * H:3 * H])
        o = jax.nn.sigmoid(gates[:, 3 * H:4 * H])
        c_new = f * c + i * g
        h_new = o * jnp.tanh(c_new)
        return (h_new, c_new), None

    h0 = jnp.zeros((B, H), jnp.float32)
    c0 = jnp.zeros((B, H), jnp.float32)
    (h, c), _ = lax.scan(step, (h0, c0), x_tm)
    return h[None, :, :], c[None, :, :]


if __name__ == "__main__":
    # Small shapes consistent with the module: vocab=50, embed=16, hidden=32
    VOCAB, EMBED, HIDDEN = 50, 16, 32
    B, T = 2, 8

    key = jax.random.PRNGKey(0)
    k_emb, k_wih, k_whh, k_bih, k_bhh, k_x = jax.random.split(key, 6)

    bound = 1.0 / jnp.sqrt(HIDDEN)
    params = {
        "embedding": jax.random.normal(k_emb, (VOCAB, EMBED), jnp.float32),
        "w_ih": jax.random.uniform(k_wih, (4 * HIDDEN, EMBED), jnp.float32, -bound, bound),
        "w_hh": jax.random.uniform(k_whh, (4 * HIDDEN, HIDDEN), jnp.float32, -bound, bound),
        "b_ih": jax.random.uniform(k_bih, (4 * HIDDEN,), jnp.float32, -bound, bound),
        "b_hh": jax.random.uniform(k_bhh, (4 * HIDDEN,), jnp.float32, -bound, bound),
    }

    x_ids = jax.random.randint(k_x, (B, T), 0, VOCAB, dtype=jnp.int32)

    hidden, cell = jax.jit(encoder_forward)(x_ids, params)
    jax.block_until_ready((hidden, cell))

    assert hidden.shape == (1, B, HIDDEN) and cell.shape == (1, B, HIDDEN)

    # Tight check vs. a reference that mirrors the kernel's bf16 recurrent math.
    h_bf, c_bf = encoder_reference(x_ids, params, bf16_recurrent=True)
    assert jnp.allclose(hidden, h_bf, atol=1e-4, rtol=1e-4), \
        float(jnp.max(jnp.abs(hidden - h_bf)))
    assert jnp.allclose(cell, c_bf, atol=1e-4, rtol=1e-4), \
        float(jnp.max(jnp.abs(cell - c_bf)))

    # Fidelity check vs. exact f32 PyTorch semantics (tolerance accounts for
    # bf16 recurrent weights on the MXU).
    h_ref, c_ref = encoder_reference(x_ids, params, bf16_recurrent=False)
    assert jnp.allclose(hidden, h_ref, atol=3e-2, rtol=3e-2)
    assert jnp.allclose(cell, c_ref, atol=3e-2, rtol=3e-2)

    print("KERNEL_OK")
</pallas_src>

<mosaic_0001>
module attributes {stable_mosaic.version = 11 : i64} {
  func.func @lstm_kernel(%arg0: memref<8x2x512xf32, #tpu.memory_space<vmem>>, %arg1: memref<128x512xbf16, #tpu.memory_space<vmem>>, %arg2: memref<2x128xf32, #tpu.memory_space<vmem>>, %arg3: memref<2x128xf32, #tpu.memory_space<vmem>>) attributes {dimension_semantics = [], scalar_prefetch = 0 : i64, scratch_operands = 0 : i64, tpu.core_type = #tpu.core_type<tc>} {
    %cst = arith.constant 0.000000e+00 : f32
    %0 = vector.broadcast %cst : f32 to vector<2x128xf32>
    %cst_0 = arith.constant 0.000000e+00 : f32
    %1 = vector.broadcast %cst_0 : f32 to vector<2x128xf32>
    %c0_i32 = arith.constant 0 : i32
    %2 = arith.truncf %0 : vector<2x128xf32> to vector<2x128xbf16>
    %c0 = arith.constant 0 : index
    %c0_1 = arith.constant 0 : index
    %3 = vector.load %arg1[%c0, %c0_1] : memref<128x512xbf16, #tpu.memory_space<vmem>>, vector<128x512xbf16>
    %cst_2 = arith.constant dense<0.000000e+00> : vector<2x512xf32>
    %4 = tpu.matmul %2, %3, %cst_2 {dimension_numbers = #tpu.dot_dimension_numbers<[1], [0], [0], [1], [0, 0, 1, 1], [], []>} : vector<2x128xbf16>, vector<128x512xbf16>, vector<2x512xf32> -> vector<2x512xf32>
    %5 = arith.index_cast %c0_i32 : i32 to index
    %c0_3 = arith.constant 0 : index
    %c0_4 = arith.constant 0 : index
    %6 = vector.load %arg0[%5, %c0_3, %c0_4] : memref<8x2x512xf32, #tpu.memory_space<vmem>>, vector<1x2x512xf32>
    %7 = vector.shape_cast %6 : vector<1x2x512xf32> to vector<2x512xf32>
    %8 = arith.addf %7, %4 : vector<2x512xf32>
    %9 = vector.extract_strided_slice %8 {offsets = [0, 0], sizes = [2, 128], strides = [1, 1]} : vector<2x512xf32> to vector<2x128xf32>
    %10 = arith.negf %9 : vector<2x128xf32>
    %11 = math.exp %10 : vector<2x128xf32>
    %cst_5 = arith.constant 1.000000e+00 : f32
    %12 = vector.broadcast %cst_5 : f32 to vector<2x128xf32>
    %13 = arith.addf %12, %11 : vector<2x128xf32>
    %14 = arith.divf %12, %13 : vector<2x128xf32>
    %15 = vector.extract_strided_slice %8 {offsets = [0, 128], sizes = [2, 128], strides = [1, 1]} : vector<2x512xf32> to vector<2x128xf32>
    %16 = arith.negf %15 : vector<2x128xf32>
    %17 = math.exp %16 : vector<2x128xf32>
    %cst_6 = arith.constant 1.000000e+00 : f32
    %18 = vector.broadcast %cst_6 : f32 to vector<2x128xf32>
    %19 = arith.addf %18, %17 : vector<2x128xf32>
    %20 = arith.divf %18, %19 : vector<2x128xf32>
    %21 = vector.extract_strided_slice %8 {offsets = [0, 256], sizes = [2, 128], strides = [1, 1]} : vector<2x512xf32> to vector<2x128xf32>
    %22 = math.tanh %21 : vector<2x128xf32>
    %23 = vector.extract_strided_slice %8 {offsets = [0, 384], sizes = [2, 128], strides = [1, 1]} : vector<2x512xf32> to vector<2x128xf32>
    %24 = arith.negf %23 : vector<2x128xf32>
    %25 = math.exp %24 : vector<2x128xf32>
    %cst_7 = arith.constant 1.000000e+00 : f32
    %26 = vector.broadcast %cst_7 : f32 to vector<2x128xf32>
    %27 = arith.addf %26, %25 : vector<2x128xf32>
    %28 = arith.divf %26, %27 : vector<2x128xf32>
    %29 = arith.mulf %20, %1 : vector<2x128xf32>
    %30 = arith.mulf %14, %22 : vector<2x128xf32>
    %31 = arith.addf %29, %30 : vector<2x128xf32>
    %32 = math.tanh %31 : vector<2x128xf32>
    %33 = arith.mulf %28, %32 : vector<2x128xf32>
    %c1_i32 = arith.constant 1 : i32
    %34 = arith.truncf %33 : vector<2x128xf32> to vector<2x128xbf16>
    %c0_8 = arith.constant 0 : index
    %c0_9 = arith.constant 0 : index
    %35 = vector.load %arg1[%c0_8, %c0_9] : memref<128x512xbf16, #tpu.memory_space<vmem>>, vector<128x512xbf16>
    %cst_10 = arith.constant dense<0.000000e+00> : vector<2x512xf32>
    %36 = tpu.matmul %34, %35, %cst_10 {dimension_numbers = #tpu.dot_dimension_numbers<[1], [0], [0], [1], [0, 0, 1, 1], [], []>} : vector<2x128xbf16>, vector<128x512xbf16>, vector<2x512xf32> -> vector<2x512xf32>
    %37 = arith.index_cast %c1_i32 : i32 to index
    %c0_11 = arith.constant 0 : index
    %c0_12 = arith.constant 0 : index
    %38 = vector.load %arg0[%37, %c0_11, %c0_12] : memref<8x2x512xf32, #tpu.memory_space<vmem>>, vector<1x2x512xf32>
    %39 = vector.shape_cast %38 : vector<1x2x512xf32> to vector<2x512xf32>
    %40 = arith.addf %39, %36 : vector<2x512xf32>
    %41 = vector.extract_strided_slice %40 {offsets = [0, 0], sizes = [2, 128], strides = [1, 1]} : vector<2x512xf32> to vector<2x128xf32>
    %42 = arith.negf %41 : vector<2x128xf32>
    %43 = math.exp %42 : vector<2x128xf32>
    %cst_13 = arith.constant 1.000000e+00 : f32
    %44 = vector.broadcast %cst_13 : f32 to vector<2x128xf32>
    %45 = arith.addf %44, %43 : vector<2x128xf32>
    %46 = arith.divf %44, %45 : vector<2x128xf32>
    %47 = vector.extract_strided_slice %40 {offsets = [0, 128], sizes = [2, 128], strides = [1, 1]} : vector<2x512xf32> to vector<2x128xf32>
    %48 = arith.negf %47 : vector<2x128xf32>
    %49 = math.exp %48 : vector<2x128xf32>
    %cst_14 = arith.constant 1.000000e+00 : f32
    %50 = vector.broadcast %cst_14 : f32 to vector<2x128xf32>
    %51 = arith.addf %50, %49 : vector<2x128xf32>
    %52 = arith.divf %50, %51 : vector<2x128xf32>
    %53 = vector.extract_strided_slice %40 {offsets = [0, 256], sizes = [2, 128], strides = [1, 1]} : vector<2x512xf32> to vector<2x128xf32>
    %54 = math.tanh %53 : vector<2x128xf32>
    %55 = vector.extract_strided_slice %40 {offsets = [0, 384], sizes = [2, 128], strides = [1, 1]} : vector<2x512xf32> to vector<2x128xf32>
    %56 = arith.negf %55 : vector<2x128xf32>
    %57 = math.exp %56 : vector<2x128xf32>
    %cst_15 = arith.constant 1.000000e+00 : f32
    %58 = vector.broadcast %cst_15 : f32 to vector<2x128xf32>
    %59 = arith.addf %58, %57 : vector<2x128xf32>
    %60 = arith.divf %58, %59 : vector<2x128xf32>
    %61 = arith.mulf %52, %31 : vector<2x128xf32>
    %62 = arith.mulf %46, %54 : vector<2x128xf32>
    %63 = arith.addf %61, %62 : vector<2x128xf32>
    %64 = math.tanh %63 : vector<2x128xf32>
    %65 = arith.mulf %60, %64 : vector<2x128xf32>
    %c2_i32 = arith.constant 2 : i32
    %66 = arith.truncf %65 : vector<2x128xf32> to vector<2x128xbf16>
    %c0_16 = arith.constant 0 : index
    %c0_17 = arith.constant 0 : index
    %67 = vector.load %arg1[%c0_16, %c0_17] : memref<128x512xbf16, #tpu.memory_space<vmem>>, vector<128x512xbf16>
    %cst_18 = arith.constant dense<0.000000e+00> : vector<2x512xf32>
    %68 = tpu.matmul %66, %67, %cst_18 {dimension_numbers = #tpu.dot_dimension_numbers<[1], [0], [0], [1], [0, 0, 1, 1], [], []>} : vector<2x128xbf16>, vector<128x512xbf16>, vector<2x512xf32> -> vector<2x512xf32>
    %69 = arith.index_cast %c2_i32 : i32 to index
    %c0_19 = arith.constant 0 : index
    %c0_20 = arith.constant 0 : index
    %70 = vector.load %arg0[%69, %c0_19, %c0_20] : memref<8x2x512xf32, #tpu.memory_space<vmem>>, vector<1x2x512xf32>
    %71 = vector.shape_cast %70 : vector<1x2x512xf32> to vector<2x512xf32>
    %72 = arith.addf %71, %68 : vector<2x512xf32>
    %73 = vector.extract_strided_slice %72 {offsets = [0, 0], sizes = [2, 128], strides = [1, 1]} : vector<2x512xf32> to vector<2x128xf32>
    %74 = arith.negf %73 : vector<2x128xf32>
    %75 = math.exp %74 : vector<2x128xf32>
    %cst_21 = arith.constant 1.000000e+00 : f32
    %76 = vector.broadcast %cst_21 : f32 to vector<2x128xf32>
    %77 = arith.addf %76, %75 : vector<2x128xf32>
    %78 = arith.divf %76, %77 : vector<2x128xf32>
    %79 = vector.extract_strided_slice %72 {offsets = [0, 128], sizes = [2, 128], strides = [1, 1]} : vector<2x512xf32> to vector<2x128xf32>
    %80 = arith.negf %79 : vector<2x128xf32>
    %81 = math.exp %80 : vector<2x128xf32>
    %cst_22 = arith.constant 1.000000e+00 : f32
    %82 = vector.broadcast %cst_22 : f32 to vector<2x128xf32>
    %83 = arith.addf %82, %81 : vector<2x128xf32>
    %84 = arith.divf %82, %83 : vector<2x128xf32>
    %85 = vector.extract_strided_slice %72 {offsets = [0, 256], sizes = [2, 128], strides = [1, 1]} : vector<2x512xf32> to vector<2x128xf32>
    %86 = math.tanh %85 : vector<2x128xf32>
    %87 = vector.extract_strided_slice %72 {offsets = [0, 384], sizes = [2, 128], strides = [1, 1]} : vector<2x512xf32> to vector<2x128xf32>
    %88 = arith.negf %87 : vector<2x128xf32>
    %89 = math.exp %88 : vector<2x128xf32>
    %cst_23 = arith.constant 1.000000e+00 : f32
    %90 = vector.broadcast %cst_23 : f32 to vector<2x128xf32>
    %91 = arith.addf %90, %89 : vector<2x128xf32>
    %92 = arith.divf %90, %91 : vector<2x128xf32>
    %93 = arith.mulf %84, %63 : vector<2x128xf32>
    %94 = arith.mulf %78, %86 : vector<2x128xf32>
    %95 = arith.addf %93, %94 : vector<2x128xf32>
    %96 = math.tanh %95 : vector<2x128xf32>
    %97 = arith.mulf %92, %96 : vector<2x128xf32>
    %c3_i32 = arith.constant 3 : i32
    %98 = arith.truncf %97 : vector<2x128xf32> to vector<2x128xbf16>
    %c0_24 = arith.constant 0 : index
    %c0_25 = arith.constant 0 : index
    %99 = vector.load %arg1[%c0_24, %c0_25] : memref<128x512xbf16, #tpu.memory_space<vmem>>, vector<128x512xbf16>
    %cst_26 = arith.constant dense<0.000000e+00> : vector<2x512xf32>
    %100 = tpu.matmul %98, %99, %cst_26 {dimension_numbers = #tpu.dot_dimension_numbers<[1], [0], [0], [1], [0, 0, 1, 1], [], []>} : vector<2x128xbf16>, vector<128x512xbf16>, vector<2x512xf32> -> vector<2x512xf32>
    %101 = arith.index_cast %c3_i32 : i32 to index
    %c0_27 = arith.constant 0 : index
    %c0_28 = arith.constant 0 : index
    %102 = vector.load %arg0[%101, %c0_27, %c0_28] : memref<8x2x512xf32, #tpu.memory_space<vmem>>, vector<1x2x512xf32>
    %103 = vector.shape_cast %102 : vector<1x2x512xf32> to vector<2x512xf32>
    %104 = arith.addf %103, %100 : vector<2x512xf32>
    %105 = vector.extract_strided_slice %104 {offsets = [0, 0], sizes = [2, 128], strides = [1, 1]} : vector<2x512xf32> to vector<2x128xf32>
    %106 = arith.negf %105 : vector<2x128xf32>
    %107 = math.exp %106 : vector<2x128xf32>
    %cst_29 = arith.constant 1.000000e+00 : f32
    %108 = vector.broadcast %cst_29 : f32 to vector<2x128xf32>
    %109 = arith.addf %108, %107 : vector<2x128xf32>
    %110 = arith.divf %108, %109 : vector<2x128xf32>
    %111 = vector.extract_strided_slice %104 {offsets = [0, 128], sizes = [2, 128], strides = [1, 1]} : vector<2x512xf32> to vector<2x128xf32>
    %112 = arith.negf %111 : vector<2x128xf32>
    %113 = math.exp %112 : vector<2x128xf32>
    %cst_30 = arith.constant 1.000000e+00 : f32
    %114 = vector.broadcast %cst_30 : f32 to vector<2x128xf32>
    %115 = arith.addf %114, %113 : vector<2x128xf32>
    %116 = arith.divf %114, %115 : vector<2x128xf32>
    %117 = vector.extract_strided_slice %104 {offsets = [0, 256], sizes = [2, 128], strides = [1, 1]} : vector<2x512xf32> to vector<2x128xf32>
    %118 = math.tanh %117 : vector<2x128xf32>
    %119 = vector.extract_strided_slice %104 {offsets = [0, 384], sizes = [2, 128], strides = [1, 1]} : vector<2x512xf32> to vector<2x128xf32>
    %120 = arith.negf %119 : vector<2x128xf32>
    %121 = math.exp %120 : vector<2x128xf32>
    %cst_31 = arith.constant 1.000000e+00 : f32
    %122 = vector.broadcast %cst_31 : f32 to vector<2x128xf32>
    %123 = arith.addf %122, %121 : vector<2x128xf32>
    %124 = arith.divf %122, %123 : vector<2x128xf32>
    %125 = arith.mulf %116, %95 : vector<2x128xf32>
    %126 = arith.mulf %110, %118 : vector<2x128xf32>
    %127 = arith.addf %125, %126 : vector<2x128xf32>
    %128 = math.tanh %127 : vector<2x128xf32>
    %129 = arith.mulf %124, %128 : vector<2x128xf32>
    %c4_i32 = arith.constant 4 : i32
    %130 = arith.truncf %129 : vector<2x128xf32> to vector<2x128xbf16>
    %c0_32 = arith.constant 0 : index
    %c0_33 = arith.constant 0 : index
    %131 = vector.load %arg1[%c0_32, %c0_33] : memref<128x512xbf16, #tpu.memory_space<vmem>>, vector<128x512xbf16>
    %cst_34 = arith.constant dense<0.000000e+00> : vector<2x512xf32>
    %132 = tpu.matmul %130, %131, %cst_34 {dimension_numbers = #tpu.dot_dimension_numbers<[1], [0], [0], [1], [0, 0, 1, 1], [], []>} : vector<2x128xbf16>, vector<128x512xbf16>, vector<2x512xf32> -> vector<2x512xf32>
    %133 = arith.index_cast %c4_i32 : i32 to index
    %c0_35 = arith.constant 0 : index
    %c0_36 = arith.constant 0 : index
    %134 = vector.load %arg0[%133, %c0_35, %c0_36] : memref<8x2x512xf32, #tpu.memory_space<vmem>>, vector<1x2x512xf32>
    %135 = vector.shape_cast %134 : vector<1x2x512xf32> to vector<2x512xf32>
    %136 = arith.addf %135, %132 : vector<2x512xf32>
    %137 = vector.extract_strided_slice %136 {offsets = [0, 0], sizes = [2, 128], strides = [1, 1]} : vector<2x512xf32> to vector<2x128xf32>
    %138 = arith.negf %137 : vector<2x128xf32>
    %139 = math.exp %138 : vector<2x128xf32>
    %cst_37 = arith.constant 1.000000e+00 : f32
    %140 = vector.broadcast %cst_37 : f32 to vector<2x128xf32>
    %141 = arith.addf %140, %139 : vector<2x128xf32>
    %142 = arith.divf %140, %141 : vector<2x128xf32>
    %143 = vector.extract_strided_slice %136 {offsets = [0, 128], sizes = [2, 128], strides = [1, 1]} : vector<2x512xf32> to vector<2x128xf32>
    %144 = arith.negf %143 : vector<2x128xf32>
    %145 = math.exp %144 : vector<2x128xf32>
    %cst_38 = arith.constant 1.000000e+00 : f32
    %146 = vector.broadcast %cst_38 : f32 to vector<2x128xf32>
    %147 = arith.addf %146, %145 : vector<2x128xf32>
    %148 = arith.divf %146, %147 : vector<2x128xf32>
    %149 = vector.extract_strided_slice %136 {offsets = [0, 256], sizes = [2, 128], strides = [1, 1]} : vector<2x512xf32> to vector<2x128xf32>
    %150 = math.tanh %149 : vector<2x128xf32>
    %151 = vector.extract_strided_slice %136 {offsets = [0, 384], sizes = [2, 128], strides = [1, 1]} : vector<2x512xf32> to vector<2x128xf32>
    %152 = arith.negf %151 : vector<2x128xf32>
    %153 = math.exp %152 : vector<2x128xf32>
    %cst_39 = arith.constant 1.000000e+00 : f32
    %154 = vector.broadcast %cst_39 : f32 to vector<2x128xf32>
    %155 = arith.addf %154, %153 : vector<2x128xf32>
    %156 = arith.divf %154, %155 : vector<2x128xf32>
    %157 = arith.mulf %148, %127 : vector<2x128xf32>
    %158 = arith.mulf %142, %150 : vector<2x128xf32>
    %159 = arith.addf %157, %158 : vector<2x128xf32>
    %160 = math.tanh %159 : vector<2x128xf32>
    %161 = arith.mulf %156, %160 : vector<2x128xf32>
    %c5_i32 = arith.constant 5 : i32
    %162 = arith.truncf %161 : vector<2x128xf32> to vector<2x128xbf16>
    %c0_40 = arith.constant 0 : index
    %c0_41 = arith.constant 0 : index
    %163 = vector.load %arg1[%c0_40, %c0_41] : memref<128x512xbf16, #tpu.memory_space<vmem>>, vector<128x512xbf16>
    %cst_42 = arith.constant dense<0.000000e+00> : vector<2x512xf32>
    %164 = tpu.matmul %162, %163, %cst_42 {dimension_numbers = #tpu.dot_dimension_numbers<[1], [0], [0], [1], [0, 0, 1, 1], [], []>} : vector<2x128xbf16>, vector<128x512xbf16>, vector<2x512xf32> -> vector<2x512xf32>
    %165 = arith.index_cast %c5_i32 : i32 to index
    %c0_43 = arith.constant 0 : index
    %c0_44 = arith.constant 0 : index
    %166 = vector.load %arg0[%165, %c0_43, %c0_44] : memref<8x2x512xf32, #tpu.memory_space<vmem>>, vector<1x2x512xf32>
    %167 = vector.shape_cast %166 : vector<1x2x512xf32> to vector<2x512xf32>
    %168 = arith.addf %167, %164 : vector<2x512xf32>
    %169 = vector.extract_strided_slice %168 {offsets = [0, 0], sizes = [2, 128], strides = [1, 1]} : vector<2x512xf32> to vector<2x128xf32>
    %170 = arith.negf %169 : vector<2x128xf32>
    %171 = math.exp %170 : vector<2x128xf32>
    %cst_45 = arith.constant 1.000000e+00 : f32
    %172 = vector.broadcast %cst_45 : f32 to vector<2x128xf32>
    %173 = arith.addf %172, %171 : vector<2x128xf32>
    %174 = arith.divf %172, %173 : vector<2x128xf32>
    %175 = vector.extract_strided_slice %168 {offsets = [0, 128], sizes = [2, 128], strides = [1, 1]} : vector<2x512xf32> to vector<2x128xf32>
    %176 = arith.negf %175 : vector<2x128xf32>
    %177 = math.exp %176 : vector<2x128xf32>
    %cst_46 = arith.constant 1.000000e+00 : f32
    %178 = vector.broadcast %cst_46 : f32 to vector<2x128xf32>
    %179 = arith.addf %178, %177 : vector<2x128xf32>
    %180 = arith.divf %178, %179 : vector<2x128xf32>
    %181 = vector.extract_strided_slice %168 {offsets = [0, 256], sizes = [2, 128], strides = [1, 1]} : vector<2x512xf32> to vector<2x128xf32>
    %182 = math.tanh %181 : vector<2x128xf32>
    %183 = vector.extract_strided_slice %168 {offsets = [0, 384], sizes = [2, 128], strides = [1, 1]} : vector<2x512xf32> to vector<2x128xf32>
    %184 = arith.negf %183 : vector<2x128xf32>
    %185 = math.exp %184 : vector<2x128xf32>
    %cst_47 = arith.constant 1.000000e+00 : f32
    %186 = vector.broadcast %cst_47 : f32 to vector<2x128xf32>
    %187 = arith.addf %186, %185 : vector<2x128xf32>
    %188 = arith.divf %186, %187 : vector<2x128xf32>
    %189 = arith.mulf %180, %159 : vector<2x128xf32>
    %190 = arith.mulf %174, %182 : vector<2x128xf32>
    %191 = arith.addf %189, %190 : vector<2x128xf32>
    %192 = math.tanh %191 : vector<2x128xf32>
    %193 = arith.mulf %188, %192 : vector<2x128xf32>
    %c6_i32 = arith.constant 6 : i32
    %194 = arith.truncf %193 : vector<2x128xf32> to vector<2x128xbf16>
    %c0_48 = arith.constant 0 : index
    %c0_49 = arith.constant 0 : index
    %195 = vector.load %arg1[%c0_48, %c0_49] : memref<128x512xbf16, #tpu.memory_space<vmem>>, vector<128x512xbf16>
    %cst_50 = arith.constant dense<0.000000e+00> : vector<2x512xf32>
    %196 = tpu.matmul %194, %195, %cst_50 {dimension_numbers = #tpu.dot_dimension_numbers<[1], [0], [0], [1], [0, 0, 1, 1], [], []>} : vector<2x128xbf16>, vector<128x512xbf16>, vector<2x512xf32> -> vector<2x512xf32>
    %197 = arith.index_cast %c6_i32 : i32 to index
    %c0_51 = arith.constant 0 : index
    %c0_52 = arith.constant 0 : index
    %198 = vector.load %arg0[%197, %c0_51, %c0_52] : memref<8x2x512xf32, #tpu.memory_space<vmem>>, vector<1x2x512xf32>
    %199 = vector.shape_cast %198 : vector<1x2x512xf32> to vector<2x512xf32>
    %200 = arith.addf %199, %196 : vector<2x512xf32>
    %201 = vector.extract_strided_slice %200 {offsets = [0, 0], sizes = [2, 128], strides = [1, 1]} : vector<2x512xf32> to vector<2x128xf32>
    %202 = arith.negf %201 : vector<2x128xf32>
    %203 = math.exp %202 : vector<2x128xf32>
    %cst_53 = arith.constant 1.000000e+00 : f32
    %204 = vector.broadcast %cst_53 : f32 to vector<2x128xf32>
    %205 = arith.addf %204, %203 : vector<2x128xf32>
    %206 = arith.divf %204, %205 : vector<2x128xf32>
    %207 = vector.extract_strided_slice %200 {offsets = [0, 128], sizes = [2, 128], strides = [1, 1]} : vector<2x512xf32> to vector<2x128xf32>
    %208 = arith.negf %207 : vector<2x128xf32>
    %209 = math.exp %208 : vector<2x128xf32>
    %cst_54 = arith.constant 1.000000e+00 : f32
    %210 = vector.broadcast %cst_54 : f32 to vector<2x128xf32>
    %211 = arith.addf %210, %209 : vector<2x128xf32>
    %212 = arith.divf %210, %211 : vector<2x128xf32>
    %213 = vector.extract_strided_slice %200 {offsets = [0, 256], sizes = [2, 128], strides = [1, 1]} : vector<2x512xf32> to vector<2x128xf32>
    %214 = math.tanh %213 : vector<2x128xf32>
    %215 = vector.extract_strided_slice %200 {offsets = [0, 384], sizes = [2, 128], strides = [1, 1]} : vector<2x512xf32> to vector<2x128xf32>
    %216 = arith.negf %215 : vector<2x128xf32>
    %217 = math.exp %216 : vector<2x128xf32>
    %cst_55 = arith.constant 1.000000e+00 : f32
    %218 = vector.broadcast %cst_55 : f32 to vector<2x128xf32>
    %219 = arith.addf %218, %217 : vector<2x128xf32>
    %220 = arith.divf %218, %219 : vector<2x128xf32>
    %221 = arith.mulf %212, %191 : vector<2x128xf32>
    %222 = arith.mulf %206, %214 : vector<2x128xf32>
    %223 = arith.addf %221, %222 : vector<2x128xf32>
    %224 = math.tanh %223 : vector<2x128xf32>
    %225 = arith.mulf %220, %224 : vector<2x128xf32>
    %c7_i32 = arith.constant 7 : i32
    %226 = arith.truncf %225 : vector<2x128xf32> to vector<2x128xbf16>
    %c0_56 = arith.constant 0 : index
    %c0_57 = arith.constant 0 : index
    %227 = vector.load %arg1[%c0_56, %c0_57] : memref<128x512xbf16, #tpu.memory_space<vmem>>, vector<128x512xbf16>
    %cst_58 = arith.constant dense<0.000000e+00> : vector<2x512xf32>
    %228 = tpu.matmul %226, %227, %cst_58 {dimension_numbers = #tpu.dot_dimension_numbers<[1], [0], [0], [1], [0, 0, 1, 1], [], []>} : vector<2x128xbf16>, vector<128x512xbf16>, vector<2x512xf32> -> vector<2x512xf32>
    %229 = arith.index_cast %c7_i32 : i32 to index
    %c0_59 = arith.constant 0 : index
    %c0_60 = arith.constant 0 : index
    %230 = vector.load %arg0[%229, %c0_59, %c0_60] : memref<8x2x512xf32, #tpu.memory_space<vmem>>, vector<1x2x512xf32>
    %231 = vector.shape_cast %230 : vector<1x2x512xf32> to vector<2x512xf32>
    %232 = arith.addf %231, %228 : vector<2x512xf32>
    %233 = vector.extract_strided_slice %232 {offsets = [0, 0], sizes = [2, 128], strides = [1, 1]} : vector<2x512xf32> to vector<2x128xf32>
    %234 = arith.negf %233 : vector<2x128xf32>
    %235 = math.exp %234 : vector<2x128xf32>
    %cst_61 = arith.constant 1.000000e+00 : f32
    %236 = vector.broadcast %cst_61 : f32 to vector<2x128xf32>
    %237 = arith.addf %236, %235 : vector<2x128xf32>
    %238 = arith.divf %236, %237 : vector<2x128xf32>
    %239 = vector.extract_strided_slice %232 {offsets = [0, 128], sizes = [2, 128], strides = [1, 1]} : vector<2x512xf32> to vector<2x128xf32>
    %240 = arith.negf %239 : vector<2x128xf32>
    %241 = math.exp %240 : vector<2x128xf32>
    %cst_62 = arith.constant 1.000000e+00 : f32
    %242 = vector.broadcast %cst_62 : f32 to vector<2x128xf32>
    %243 = arith.addf %242, %241 : vector<2x128xf32>
    %244 = arith.divf %242, %243 : vector<2x128xf32>
    %245 = vector.extract_strided_slice %232 {offsets = [0, 256], sizes = [2, 128], strides = [1, 1]} : vector<2x512xf32> to vector<2x128xf32>
    %246 = math.tanh %245 : vector<2x128xf32>
    %247 = vector.extract_strided_slice %232 {offsets = [0, 384], sizes = [2, 128], strides = [1, 1]} : vector<2x512xf32> to vector<2x128xf32>
    %248 = arith.negf %247 : vector<2x128xf32>
    %249 = math.exp %248 : vector<2x128xf32>
    %cst_63 = arith.constant 1.000000e+00 : f32
    %250 = vector.broadcast %cst_63 : f32 to vector<2x128xf32>
    %251 = arith.addf %250, %249 : vector<2x128xf32>
    %252 = arith.divf %250, %251 : vector<2x128xf32>
    %253 = arith.mulf %244, %223 : vector<2x128xf32>
    %254 = arith.mulf %238, %246 : vector<2x128xf32>
    %255 = arith.addf %253, %254 : vector<2x128xf32>
    %256 = math.tanh %255 : vector<2x128xf32>
    %257 = arith.mulf %252, %256 : vector<2x128xf32>
    %c8_i32 = arith.constant 8 : i32
    %c0_64 = arith.constant 0 : index
    %c0_65 = arith.constant 0 : index
    %258 = vector.load %arg2[%c0_64, %c0_65] : memref<2x128xf32, #tpu.memory_space<vmem>>, vector<2x128xf32>
    tpu.vector_store %arg2[%c0_64, %c0_65], %257 {strides = array<i32>} : memref<2x128xf32, #tpu.memory_space<vmem>>, vector<2x128xf32>,
    %c0_66 = arith.constant 0 : index
    %c0_67 = arith.constant 0 : index
    %259 = vector.load %arg3[%c0_66, %c0_67] : memref<2x128xf32, #tpu.memory_space<vmem>>, vector<2x128xf32>
    tpu.vector_store %arg3[%c0_66, %c0_67], %255 {strides = array<i32>} : memref<2x128xf32, #tpu.memory_space<vmem>>, vector<2x128xf32>,
    return
  }
}

</mosaic_0001>

<llo_original>
// kernel: encoder_forward.1
$region0: #{encoder_forward.1}
  #allocation0 [shape = 'u32[]', space=smem, size = 0x4, offset = 0x4, fixed_abs, tag = 'smem constant byte address 0x4 - core index']
  #allocation1 [shape = 'u32[72,128]{1,0:T(1,128)}', space=vmem, size = 0x9000, scoped, tag = 'internal scratch']
  %s0 = inlined_call_operand.vmem [shape: f32[8,2,512], index: 0, kind: input, shape index: {}]
  %s1 = inlined_call_operand.vmem [shape: bf16[128,512], index: 1, kind: input, shape index: {}]
  %s2 = inlined_call_operand.vmem [shape: f32[2,128], index: 2, kind: output, shape index: {0}]
  %s3 = inlined_call_operand.vmem [shape: f32[2,128], index: 3, kind: output, shape index: {1}]
  %4 = xla_tuple %s2, %s3
  %s5 = sld [smem:[#allocation0]]
  $region26: #{encoder_forward.1} parent=0
    _
  %s7 = ssub.s32 1, %s5
  %s8 = scalar_select 0, %s7, %s5
  // Predicated region
  $region2: #{encoder_forward.1} parent=0 // pred_check
    _
  $region3: #{encoder_forward.1} parent=0 // pred_check_branch
    %10 = sbr.rel (0) target = $region5
  $region4: #{encoder_forward.1} parent=0 // pred_region
    _
  $region5: #{encoder_forward.1} parent=0 // pred_fallthru
    _
  // Predicated region
  $region6: #{encoder_forward.1} parent=0 // pred_check
    _
  $region7: #{encoder_forward.1} parent=0 // pred_check_branch
    %12 = sbr.rel (0) target = $region9
  $region8: #{encoder_forward.1} parent=0 // pred_region
    _
  $region9: #{encoder_forward.1} parent=0 // pred_fallthru
    _
  %v14 = vld [vmem:[%s1] sm:$0xff]
  %v15 = vld [vmem:[%s1 + $0x8] sm:$0xff]
  %v16 = vld [vmem:[%s1 + $0x10] sm:$0xff]
  %v17 = vld [vmem:[%s1 + $0x18] sm:$0xff]
  %v18 = vld [vmem:[%s1 + $0x20] sm:$0xff]
  %v19 = vld [vmem:[%s1 + $0x28] sm:$0xff]
  %v20 = vld [vmem:[%s1 + $0x30] sm:$0xff]
  %v21 = vld [vmem:[%s1 + $0x38] sm:$0xff]
  %v22 = vld [vmem:[%s1 + $0x40] sm:$0xff]
  %v23 = vld [vmem:[%s1 + $0x48] sm:$0xff]
  %v24 = vld [vmem:[%s1 + $0x50] sm:$0xff]
  %v25 = vld [vmem:[%s1 + $0x58] sm:$0xff]
  %v26 = vld [vmem:[%s1 + $0x60] sm:$0xff]
  %v27 = vld [vmem:[%s1 + $0x68] sm:$0xff]
  %v28 = vld [vmem:[%s1 + $0x70] sm:$0xff]
  %v29 = vld [vmem:[%s1 + $0x78] sm:$0xff]
  %v30 = vld [vmem:[%s1 + $0x80] sm:$0xff]
  %v31 = vld [vmem:[%s1 + $0x88] sm:$0xff]
  %v32 = vld [vmem:[%s1 + $0x90] sm:$0xff]
  %v33 = vld [vmem:[%s1 + $0x98] sm:$0xff]
  %v34 = vld [vmem:[%s1 + $0xa0] sm:$0xff]
  %v35 = vld [vmem:[%s1 + $0xa8] sm:$0xff]
  %v36 = vld [vmem:[%s1 + $0xb0] sm:$0xff]
  %v37 = vld [vmem:[%s1 + $0xb8] sm:$0xff]
  %v38 = vld [vmem:[%s1 + $0xc0] sm:$0xff]
  %v39 = vld [vmem:[%s1 + $0xc8] sm:$0xff]
  %v40 = vld [vmem:[%s1 + $0xd0] sm:$0xff]
  %v41 = vld [vmem:[%s1 + $0xd8] sm:$0xff]
  %v42 = vld [vmem:[%s1 + $0xe0] sm:$0xff]
  %v43 = vld [vmem:[%s1 + $0xe8] sm:$0xff]
  %v44 = vld [vmem:[%s1 + $0xf0] sm:$0xff]
  %v45 = vld [vmem:[%s1 + $0xf8] sm:$0xff]
  %v78 = vunpack.c.l.b16 %v14
  %v79 = vunpack.c.h.b16 %v14
  %v80 = vunpack.c.l.b16 %v15
  %v81 = vunpack.c.h.b16 %v15
  %v82 = vunpack.c.l.b16 %v16
  %v83 = vunpack.c.h.b16 %v16
  %v84 = vunpack.c.l.b16 %v17
  %v85 = vunpack.c.h.b16 %v17
  %v86 = vunpack.c.l.b16 %v18
  %v87 = vunpack.c.h.b16 %v18
  %v88 = vunpack.c.l.b16 %v19
  %v89 = vunpack.c.h.b16 %v19
  %v90 = vunpack.c.l.b16 %v20
  %v91 = vunpack.c.h.b16 %v20
  %v92 = vunpack.c.l.b16 %v21
  %v93 = vunpack.c.h.b16 %v21
  %v94 = vunpack.c.l.b16 %v22
  %v95 = vunpack.c.h.b16 %v22
  %v96 = vunpack.c.l.b16 %v23
  %v97 = vunpack.c.h.b16 %v23
  %v98 = vunpack.c.l.b16 %v24
  %v99 = vunpack.c.h.b16 %v24
  %v100 = vunpack.c.l.b16 %v25
  %v101 = vunpack.c.h.b16 %v25
  %v102 = vunpack.c.l.b16 %v26
  %v103 = vunpack.c.h.b16 %v26
  %v104 = vunpack.c.l.b16 %v27
  %v105 = vunpack.c.h.b16 %v27
  %v106 = vunpack.c.l.b16 %v28
  %v107 = vunpack.c.h.b16 %v28
  %v108 = vunpack.c.l.b16 %v29
  %v109 = vunpack.c.h.b16 %v29
  %v110 = vunpack.c.l.b16 %v30
  %v111 = vunpack.c.h.b16 %v30
  %v112 = vunpack.c.l.b16 %v31
  %v113 = vunpack.c.h.b16 %v31
  %v114 = vunpack.c.l.b16 %v32
  %v115 = vunpack.c.h.b16 %v32
  %v116 = vunpack.c.l.b16 %v33
  %v117 = vunpack.c.h.b16 %v33
  %v118 = vunpack.c.l.b16 %v34
  %v119 = vunpack.c.h.b16 %v34
  %v120 = vunpack.c.l.b16 %v35
  %v121 = vunpack.c.h.b16 %v35
  %v122 = vunpack.c.l.b16 %v36
  %v123 = vunpack.c.h.b16 %v36
  %v124 = vunpack.c.l.b16 %v37
  %v125 = vunpack.c.h.b16 %v37
  %v126 = vunpack.c.l.b16 %v38
  %v127 = vunpack.c.h.b16 %v38
  %v128 = vunpack.c.l.b16 %v39
  %v129 = vunpack.c.h.b16 %v39
  %v130 = vunpack.c.l.b16 %v40
  %v131 = vunpack.c.h.b16 %v40
  %v132 = vunpack.c.l.b16 %v41
  %v133 = vunpack.c.h.b16 %v41
  %v134 = vunpack.c.l.b16 %v42
  %v135 = vunpack.c.h.b16 %v42
  %v136 = vunpack.c.l.b16 %v43
  %v137 = vunpack.c.h.b16 %v43
  %v138 = vunpack.c.l.b16 %v44
  %v139 = vunpack.c.h.b16 %v44
  %v140 = vunpack.c.l.b16 %v45
  %v141 = vunpack.c.h.b16 %v45
  %v142 = vpack.c.b16 %v82, %v78
  %v143 = vpack.c.b16 %v83, %v79
  %v144 = vpack.c.b16 %v84, %v80
  %v145 = vpack.c.b16 %v85, %v81
  %v146 = vpack.c.b16 %v90, %v86
  %v147 = vpack.c.b16 %v91, %v87
  %v148 = vpack.c.b16 %v92, %v88
  %v149 = vpack.c.b16 %v93, %v89
  %v150 = vpack.c.b16 %v98, %v94
  %v151 = vpack.c.b16 %v99, %v95
  %v152 = vpack.c.b16 %v100, %v96
  %v153 = vpack.c.b16 %v101, %v97
  %v154 = vpack.c.b16 %v106, %v102
  %v155 = vpack.c.b16 %v107, %v103
  %v156 = vpack.c.b16 %v108, %v104
  %v157 = vpack.c.b16 %v109, %v105
  %v158 = vpack.c.b16 %v114, %v110
  %v159 = vpack.c.b16 %v115, %v111
  %v160 = vpack.c.b16 %v116, %v112
  %v161 = vpack.c.b16 %v117, %v113
  %v162 = vpack.c.b16 %v122, %v118
  %v163 = vpack.c.b16 %v123, %v119
  %v164 = vpack.c.b16 %v124, %v120
  %v165 = vpack.c.b16 %v125, %v121
  %v166 = vpack.c.b16 %v130, %v126
  %v167 = vpack.c.b16 %v131, %v127
  %v168 = vpack.c.b16 %v132, %v128
  %v169 = vpack.c.b16 %v133, %v129
  %v170 = vpack.c.b16 %v138, %v134
  %v171 = vpack.c.b16 %v139, %v135
  %v172 = vpack.c.b16 %v140, %v136
  %v173 = vpack.c.b16 %v141, %v137
  %206 = vmatpush.bf16.msra.mxu0 %v170
  %207 = vmatpush.bf16.msra.mxu0 %v166
  %208 = vmatpush.bf16.msra.mxu0 %v162
  %209 = vmatpush.bf16.msra.mxu0 %v158
  %210 = vmatpush.bf16.msra.mxu0 %v154
  %211 = vmatpush.bf16.msra.mxu0 %v150
  %212 = vmatpush.bf16.msra.mxu0 %v146
  %213 = vmatpush.bf16.msra.mxu0 %v142
  %214 = vmatmul.bf16.gmra.mxu0 0
  %v215 = vpop.f32.mrf.mxu0
  %v216 = vadd.f32 0.0, %v215
  %v217 = vpop.f32.mrf.mxu0
  %218 = vdwg.mxu0
  %219 = vmatpush.bf16.msra.mxu0 %v171
  %220 = vmatpush.bf16.msra.mxu0 %v167
  %221 = vmatpush.bf16.msra.mxu0 %v163
  %222 = vmatpush.bf16.msra.mxu0 %v159
  %223 = vmatpush.bf16.msra.mxu0 %v155
  %224 = vmatpush.bf16.msra.mxu0 %v151
  %225 = vmatpush.bf16.msra.mxu0 %v147
  %226 = vmatpush.bf16.msra.mxu0 %v143
  %227 = vmatmul.bf16.gmra.mxu0 0
  %v228 = vpop.f32.mrf.mxu0
  %v229 = vadd.f32 0.0, %v228
  %v230 = vpop.f32.mrf.mxu0
  %231 = vdwg.mxu0
  %232 = vmatpush.bf16.msra.mxu0 %v172
  %233 = vmatpush.bf16.msra.mxu0 %v168
  %234 = vmatpush.bf16.msra.mxu0 %v164
  %235 = vmatpush.bf16.msra.mxu0 %v160
  %236 = vmatpush.bf16.msra.mxu0 %v156
  %237 = vmatpush.bf16.msra.mxu0 %v152
  %238 = vmatpush.bf16.msra.mxu0 %v148
  %239 = vmatpush.bf16.msra.mxu0 %v144
  %240 = vmatmul.bf16.gmra.mxu0 0
  %v241 = vpop.f32.mrf.mxu0
  %v242 = vadd.f32 0.0, %v241
  %v243 = vpop.f32.mrf.mxu0
  %244 = vdwg.mxu0
  %245 = vmatpush.bf16.msra.mxu0 %v173
  %246 = vmatpush.bf16.msra.mxu0 %v169
  %247 = vmatpush.bf16.msra.mxu0 %v165
  %248 = vmatpush.bf16.msra.mxu0 %v161
  %249 = vmatpush.bf16.msra.mxu0 %v157
  %250 = vmatpush.bf16.msra.mxu0 %v153
  %251 = vmatpush.bf16.msra.mxu0 %v149
  %252 = vmatpush.bf16.msra.mxu0 %v145
  %253 = vmatmul.bf16.gmra.mxu0 0
  %v254 = vpop.f32.mrf.mxu0
  %v255 = vadd.f32 0.0, %v254
  %v256 = vpop.f32.mrf.mxu0
  %257 = vdwg.mxu0
  %v258 = vld [vmem:[%s0] sm:$0xff]
  %v263 = vrot.slane %v229, 6
  %v264 = vrot.slane %v242, 4
  %v265 = vrot.slane %v255, 2
  %vm266 = vcmask 1041408
  %v267 = vsel %vm266, %v216, %v263
  %vm268 = vcmask 1045508
  %v269 = vsel %vm268, %v264, %v265
  %vm270 = vcmask 1043456
  %v271 = vsel %vm270, %v267, %v269
  %v273 = vadd.f32 %v258, %v271
  %v274 = vxor.u32 %v273, 2147483648
  %v275 = vmul.f32 %v274, 1.442695
  %v276 = vpow.pop %v275
  %v277 = vadd.f32 %v276, 1.0
  %v278 = vrcp.pop %v277
  %v279 = vmul.f32 %v277, %v278
  %v280 = vsub.f32 1.0, %v279
  %v281 = vmul.f32 %v278, %v280
  %v282 = vadd.f32 %v278, %v281
  %vm283 = vweird.f32 %v277
  %vm284 = vweird.f32 %v278
  %vm285 = vmor %vm283, %vm284
  %v286 = vsel %vm285, %v278, %v282
  %v287 = vand.u32 2147483647, %v277
  %vm288 = vcmp.eq.f32.partialorder %v287, 8.507059e+37
  %v289 = vand.u32 %v277, 2147483648
  %v290 = vor.u32 1.1754944e-38, %v289
  %v291 = vsel %vm288, %v290, %v286
  %v292 = vmul.f32 1.0, %v291
  %v294 = vrot.slane %v273, 2
  %v296 = vxor.u32 %v294, 2147483648
  %v297 = vmul.f32 %v296, 1.442695
  %v298 = vpow.pop %v297
  %v299 = vadd.f32 %v298, 1.0
  %v300 = vrcp.pop %v299
  %v301 = vmul.f32 %v299, %v300
  %v302 = vsub.f32 1.0, %v301
  %v303 = vmul.f32 %v300, %v302
  %v304 = vadd.f32 %v300, %v303
  %vm305 = vweird.f32 %v299
  %vm306 = vweird.f32 %v300
  %vm307 = vmor %vm305, %vm306
  %v308 = vsel %vm307, %v300, %v304
  %v309 = vand.u32 2147483647, %v299
  %vm310 = vcmp.eq.f32.partialorder %v309, 8.507059e+37
  %v311 = vand.u32 %v299, 2147483648
  %v312 = vor.u32 1.1754944e-38, %v311
  %v313 = vsel %vm310, %v312, %v308
  %v314 = vmul.f32 1.0, %v313
  %v315 = vrot.slane %v273, 4
  %v317 = vtanh.pop %v315
  %v318 = vrot.slane %v273, 6
  %v320 = vxor.u32 %v318, 2147483648
  %v321 = vmul.f32 %v320, 1.442695
  %v322 = vpow.pop %v321
  %v323 = vadd.f32 %v322, 1.0
  %v324 = vrcp.pop %v323
  %v325 = vmul.f32 %v323, %v324
  %v326 = vsub.f32 1.0, %v325
  %v327 = vmul.f32 %v324, %v326
  %v328 = vadd.f32 %v324, %v327
  %vm329 = vweird.f32 %v323
  %vm330 = vweird.f32 %v324
  %vm331 = vmor %vm329, %vm330
  %v332 = vsel %vm331, %v324, %v328
  %v333 = vand.u32 2147483647, %v323
  %vm334 = vcmp.eq.f32.partialorder %v333, 8.507059e+37
  %v335 = vand.u32 %v323, 2147483648
  %v336 = vor.u32 1.1754944e-38, %v335
  %v337 = vsel %vm334, %v336, %v332
  %v338 = vmul.f32 1.0, %v337
  %v339 = vmul.f32 %v314, 0.0
  %v340 = vmul.f32 %v292, %v317
  %v341 = vadd.f32 %v339, %v340
  %v342 = vtanh.pop %v341
  %v343 = vmul.f32 %v338, %v342
  %v344 = vpack.c.bf16 %v343, %v343
  %345 = vmatpush.bf16.msra.mxu0 %v170
  %346 = vmatpush.bf16.msra.mxu0 %v166
  %347 = vmatpush.bf16.msra.mxu0 %v162
  %348 = vmatpush.bf16.msra.mxu0 %v158
  %349 = vmatpush.bf16.msra.mxu0 %v154
  %350 = vmatpush.bf16.msra.mxu0 %v150
  %351 = vmatpush.bf16.msra.mxu0 %v146
  %352 = vmatpush.bf16.msra.mxu0 %v142
  %353 = vmatmul.bf16.gmra.mxu0 %v344
  %v354 = vpop.f32.mrf.mxu0
  %v355 = vadd.f32 0.0, %v354
  %v356 = vpop.f32.mrf.mxu0
  %357 = vdwg.mxu0
  %358 = vmatpush.bf16.msra.mxu0 %v171
  %359 = vmatpush.bf16.msra.mxu0 %v167
  %360 = vmatpush.bf16.msra.mxu0 %v163
  %361 = vmatpush.bf16.msra.mxu0 %v159
  %362 = vmatpush.bf16.msra.mxu0 %v155
  %363 = vmatpush.bf16.msra.mxu0 %v151
  %364 = vmatpush.bf16.msra.mxu0 %v147
  %365 = vmatpush.bf16.msra.mxu0 %v143
  %366 = vmatmul.bf16.gmra.mxu0 %v344
  %v367 = vpop.f32.mrf.mxu0
  %v368 = vadd.f32 0.0, %v367
  %v369 = vpop.f32.mrf.mxu0
  %370 = vdwg.mxu0
  %371 = vmatpush.bf16.msra.mxu0 %v172
  %372 = vmatpush.bf16.msra.mxu0 %v168
  %373 = vmatpush.bf16.msra.mxu0 %v164
  %374 = vmatpush.bf16.msra.mxu0 %v160
  %375 = vmatpush.bf16.msra.mxu0 %v156
  %376 = vmatpush.bf16.msra.mxu0 %v152
  %377 = vmatpush.bf16.msra.mxu0 %v148
  %378 = vmatpush.bf16.msra.mxu0 %v144
  %379 = vmatmul.bf16.gmra.mxu0 %v344
  %v380 = vpop.f32.mrf.mxu0
  %v381 = vadd.f32 0.0, %v380
  %v382 = vpop.f32.mrf.mxu0
  %383 = vdwg.mxu0
  %384 = vmatpush.bf16.msra.mxu0 %v173
  %385 = vmatpush.bf16.msra.mxu0 %v169
  %386 = vmatpush.bf16.msra.mxu0 %v165
  %387 = vmatpush.bf16.msra.mxu0 %v161
  %388 = vmatpush.bf16.msra.mxu0 %v157
  %389 = vmatpush.bf16.msra.mxu0 %v153
  %390 = vmatpush.bf16.msra.mxu0 %v149
  %391 = vmatpush.bf16.msra.mxu0 %v145
  %392 = vmatmul.bf16.gmra.mxu0 %v344
  %v393 = vpop.f32.mrf.mxu0
  %v394 = vadd.f32 0.0, %v393
  %v395 = vpop.f32.mrf.mxu0
  %396 = vdwg.mxu0
  %s397 = scalar_lea.vmem %s0, 8
  %v398 = vld [vmem:[%s397] sm:$0xff]
  %v403 = vrot.slane %v368, 6
  %v404 = vrot.slane %v381, 4
  %v405 = vrot.slane %v394, 2
  %v406 = vsel %vm266, %v355, %v403
  %v407 = vsel %vm268, %v404, %v405
  %v408 = vsel %vm270, %v406, %v407
  %v410 = vadd.f32 %v398, %v408
  %v411 = vxor.u32 %v410, 2147483648
  %v412 = vmul.f32 %v411, 1.442695
  %v413 = vpow.pop %v412
  %v414 = vadd.f32 %v413, 1.0
  %v415 = vrcp.pop %v414
  %v416 = vmul.f32 %v414, %v415
  %v417 = vsub.f32 1.0, %v416
  %v418 = vmul.f32 %v415, %v417
  %v419 = vadd.f32 %v415, %v418
  %vm420 = vweird.f32 %v414
  %vm421 = vweird.f32 %v415
  %vm422 = vmor %vm420, %vm421
  %v423 = vsel %vm422, %v415, %v419
  %v424 = vand.u32 2147483647, %v414
  %vm425 = vcmp.eq.f32.partialorder %v424, 8.507059e+37
  %v426 = vand.u32 %v414, 2147483648
  %v427 = vor.u32 1.1754944e-38, %v426
  %v428 = vsel %vm425, %v427, %v423
  %v429 = vmul.f32 1.0, %v428
  %v431 = vrot.slane %v410, 2
  %v433 = vxor.u32 %v431, 2147483648
  %v434 = vmul.f32 %v433, 1.442695
  %v435 = vpow.pop %v434
  %v436 = vadd.f32 %v435, 1.0
  %v437 = vrcp.pop %v436
  %v438 = vmul.f32 %v436, %v437
  %v439 = vsub.f32 1.0, %v438
  %v440 = vmul.f32 %v437, %v439
  %v441 = vadd.f32 %v437, %v440
  %vm442 = vweird.f32 %v436
  %vm443 = vweird.f32 %v437
  %vm444 = vmor %vm442, %vm443
  %v445 = vsel %vm444, %v437, %v441
  %v446 = vand.u32 2147483647, %v436
  %vm447 = vcmp.eq.f32.partialorder %v446, 8.507059e+37
  %v448 = vand.u32 %v436, 2147483648
  %v449 = vor.u32 1.1754944e-38, %v448
  %v450 = vsel %vm447, %v449, %v445
  %v451 = vmul.f32 1.0, %v450
  %v452 = vrot.slane %v410, 4
  %v454 = vtanh.pop %v452
  %v455 = vrot.slane %v410, 6
  %v457 = vxor.u32 %v455, 2147483648
  %v458 = vmul.f32 %v457, 1.442695
  %v459 = vpow.pop %v458
  %v460 = vadd.f32 %v459, 1.0
  %v461 = vrcp.pop %v460
  %v462 = vmul.f32 %v460, %v461
  %v463 = vsub.f32 1.0, %v462
  %v464 = vmul.f32 %v461, %v463
  %v465 = vadd.f32 %v461, %v464
  %vm466 = vweird.f32 %v460
  %vm467 = vweird.f32 %v461
  %vm468 = vmor %vm466, %vm467
  %v469 = vsel %vm468, %v461, %v465
  %v470 = vand.u32 2147483647, %v460
  %vm471 = vcmp.eq.f32.partialorder %v470, 8.507059e+37
  %v472 = vand.u32 %v460, 2147483648
  %v473 = vor.u32 1.1754944e-38, %v472
  %v474 = vsel %vm471, %v473, %v469
  %v475 = vmul.f32 1.0, %v474
  %v476 = vmul.f32 %v451, %v341
  %v477 = vmul.f32 %v429, %v454
  %v478 = vadd.f32 %v476, %v477
  %v479 = vtanh.pop %v478
  %v480 = vmul.f32 %v475, %v479
  %v481 = vpack.c.bf16 %v480, %v480
  %482 = vmatpush.bf16.msra.mxu0 %v170
  %483 = vmatpush.bf16.msra.mxu0 %v166
  %484 = vmatpush.bf16.msra.mxu0 %v162
  %485 = vmatpush.bf16.msra.mxu0 %v158
  %486 = vmatpush.bf16.msra.mxu0 %v154
  %487 = vmatpush.bf16.msra.mxu0 %v150
  %488 = vmatpush.bf16.msra.mxu0 %v146
  %489 = vmatpush.bf16.msra.mxu0 %v142
  %490 = vmatmul.bf16.gmra.mxu0 %v481
  %v491 = vpop.f32.mrf.mxu0
  %v492 = vadd.f32 0.0, %v491
  %v493 = vpop.f32.mrf.mxu0
  %494 = vdwg.mxu0
  %495 = vmatpush.bf16.msra.mxu0 %v171
  %496 = vmatpush.bf16.msra.mxu0 %v167
  %497 = vmatpush.bf16.msra.mxu0 %v163
  %498 = vmatpush.bf16.msra.mxu0 %v159
  %499 = vmatpush.bf16.msra.mxu0 %v155
  %500 = vmatpush.bf16.msra.mxu0 %v151
  %501 = vmatpush.bf16.msra.mxu0 %v147
  %502 = vmatpush.bf16.msra.mxu0 %v143
  %503 = vmatmul.bf16.gmra.mxu0 %v481
  %v504 = vpop.f32.mrf.mxu0
  %v505 = vadd.f32 0.0, %v504
  %v506 = vpop.f32.mrf.mxu0
  %507 = vdwg.mxu0
  %508 = vmatpush.bf16.msra.mxu0 %v172
  %509 = vmatpush.bf16.msra.mxu0 %v168
  %510 = vmatpush.bf16.msra.mxu0 %v164
  %511 = vmatpush.bf16.msra.mxu0 %v160
  %512 = vmatpush.bf16.msra.mxu0 %v156
  %513 = vmatpush.bf16.msra.mxu0 %v152
  %514 = vmatpush.bf16.msra.mxu0 %v148
  %515 = vmatpush.bf16.msra.mxu0 %v144
  %516 = vmatmul.bf16.gmra.mxu0 %v481
  %v517 = vpop.f32.mrf.mxu0
  %v518 = vadd.f32 0.0, %v517
  %v519 = vpop.f32.mrf.mxu0
  %520 = vdwg.mxu0
  %521 = vmatpush.bf16.msra.mxu0 %v173
  %522 = vmatpush.bf16.msra.mxu0 %v169
  %523 = vmatpush.bf16.msra.mxu0 %v165
  %524 = vmatpush.bf16.msra.mxu0 %v161
  %525 = vmatpush.bf16.msra.mxu0 %v157
  %526 = vmatpush.bf16.msra.mxu0 %v153
  %527 = vmatpush.bf16.msra.mxu0 %v149
  %528 = vmatpush.bf16.msra.mxu0 %v145
  %529 = vmatmul.bf16.gmra.mxu0 %v481
  %v530 = vpop.f32.mrf.mxu0
  %v531 = vadd.f32 0.0, %v530
  %v532 = vpop.f32.mrf.mxu0
  %533 = vdwg.mxu0
  %s534 = scalar_lea.vmem %s0, 16
  %v535 = vld [vmem:[%s534] sm:$0xff]
  %v540 = vrot.slane %v505, 6
  %v541 = vrot.slane %v518, 4
  %v542 = vrot.slane %v531, 2
  %v543 = vsel %vm266, %v492, %v540
  %v544 = vsel %vm268, %v541, %v542
  %v545 = vsel %vm270, %v543, %v544
  %v547 = vadd.f32 %v535, %v545
  %v548 = vxor.u32 %v547, 2147483648
  %v549 = vmul.f32 %v548, 1.442695
  %v550 = vpow.pop %v549
  %v551 = vadd.f32 %v550, 1.0
  %v552 = vrcp.pop %v551
  %v553 = vmul.f32 %v551, %v552
  %v554 = vsub.f32 1.0, %v553
  %v555 = vmul.f32 %v552, %v554
  %v556 = vadd.f32 %v552, %v555
  %vm557 = vweird.f32 %v551
  %vm558 = vweird.f32 %v552
  %vm559 = vmor %vm557, %vm558
  %v560 = vsel %vm559, %v552, %v556
  %v561 = vand.u32 2147483647, %v551
  %vm562 = vcmp.eq.f32.partialorder %v561, 8.507059e+37
  %v563 = vand.u32 %v551, 2147483648
  %v564 = vor.u32 1.1754944e-38, %v563
  %v565 = vsel %vm562, %v564, %v560
  %v566 = vmul.f32 1.0, %v565
  %v568 = vrot.slane %v547, 2
  %v570 = vxor.u32 %v568, 2147483648
  %v571 = vmul.f32 %v570, 1.442695
  %v572 = vpow.pop %v571
  %v573 = vadd.f32 %v572, 1.0
  %v574 = vrcp.pop %v573
  %v575 = vmul.f32 %v573, %v574
  %v576 = vsub.f32 1.0, %v575
  %v577 = vmul.f32 %v574, %v576
  %v578 = vadd.f32 %v574, %v577
  %vm579 = vweird.f32 %v573
  %vm580 = vweird.f32 %v574
  %vm581 = vmor %vm579, %vm580
  %v582 = vsel %vm581, %v574, %v578
  %v583 = vand.u32 2147483647, %v573
  %vm584 = vcmp.eq.f32.partialorder %v583, 8.507059e+37
  %v585 = vand.u32 %v573, 2147483648
  %v586 = vor.u32 1.1754944e-38, %v585
  %v587 = vsel %vm584, %v586, %v582
  %v588 = vmul.f32 1.0, %v587
  %v589 = vrot.slane %v547, 4
  %v591 = vtanh.pop %v589
  %v592 = vrot.slane %v547, 6
  %v594 = vxor.u32 %v592, 2147483648
  %v595 = vmul.f32 %v594, 1.442695
  %v596 = vpow.pop %v595
  %v597 = vadd.f32 %v596, 1.0
  %v598 = vrcp.pop %v597
  %v599 = vmul.f32 %v597, %v598
  %v600 = vsub.f32 1.0, %v599
  %v601 = vmul.f32 %v598, %v600
  %v602 = vadd.f32 %v598, %v601
  %vm603 = vweird.f32 %v597
  %vm604 = vweird.f32 %v598
  %vm605 = vmor %vm603, %vm604
  %v606 = vsel %vm605, %v598, %v602
  %v607 = vand.u32 2147483647, %v597
  %vm608 = vcmp.eq.f32.partialorder %v607, 8.507059e+37
  %v609 = vand.u32 %v597, 2147483648
  %v610 = vor.u32 1.1754944e-38, %v609
  %v611 = vsel %vm608, %v610, %v606
  %v612 = vmul.f32 1.0, %v611
  %v613 = vmul.f32 %v588, %v478
  %v614 = vmul.f32 %v566, %v591
  %v615 = vadd.f32 %v613, %v614
  %v616 = vtanh.pop %v615
  %v617 = vmul.f32 %v612, %v616
  %v618 = vpack.c.bf16 %v617, %v617
  %619 = vmatpush.bf16.msra.mxu0 %v170
  %620 = vmatpush.bf16.msra.mxu0 %v166
  %621 = vmatpush.bf16.msra.mxu0 %v162
  %622 = vmatpush.bf16.msra.mxu0 %v158
  %623 = vmatpush.bf16.msra.mxu0 %v154
  %624 = vmatpush.bf16.msra.mxu0 %v150
  %625 = vmatpush.bf16.msra.mxu0 %v146
  %626 = vmatpush.bf16.msra.mxu0 %v142
  %627 = vmatmul.bf16.gmra.mxu0 %v618
  %v628 = vpop.f32.mrf.mxu0
  %v629 = vadd.f32 0.0, %v628
  %v630 = vpop.f32.mrf.mxu0
  %631 = vdwg.mxu0
  %632 = vmatpush.bf16.msra.mxu0 %v171
  %633 = vmatpush.bf16.msra.mxu0 %v167
  %634 = vmatpush.bf16.msra.mxu0 %v163
  %635 = vmatpush.bf16.msra.mxu0 %v159
  %636 = vmatpush.bf16.msra.mxu0 %v155
  %637 = vmatpush.bf16.msra.mxu0 %v151
  %638 = vmatpush.bf16.msra.mxu0 %v147
  %639 = vmatpush.bf16.msra.mxu0 %v143
  %640 = vmatmul.bf16.gmra.mxu0 %v618
  %v641 = vpop.f32.mrf.mxu0
  %v642 = vadd.f32 0.0, %v641
  %v643 = vpop.f32.mrf.mxu0
  %644 = vdwg.mxu0
  %645 = vmatpush.bf16.msra.mxu0 %v172
  %646 = vmatpush.bf16.msra.mxu0 %v168
  %647 = vmatpush.bf16.msra.mxu0 %v164
  %648 = vmatpush.bf16.msra.mxu0 %v160
  %649 = vmatpush.bf16.msra.mxu0 %v156
  %650 = vmatpush.bf16.msra.mxu0 %v152
  %651 = vmatpush.bf16.msra.mxu0 %v148
  %652 = vmatpush.bf16.msra.mxu0 %v144
  %653 = vmatmul.bf16.gmra.mxu0 %v618
  %v654 = vpop.f32.mrf.mxu0
  %v655 = vadd.f32 0.0, %v654
  %v656 = vpop.f32.mrf.mxu0
  %657 = vdwg.mxu0
  %658 = vmatpush.bf16.msra.mxu0 %v173
  %659 = vmatpush.bf16.msra.mxu0 %v169
  %660 = vmatpush.bf16.msra.mxu0 %v165
  %661 = vmatpush.bf16.msra.mxu0 %v161
  %662 = vmatpush.bf16.msra.mxu0 %v157
  %663 = vmatpush.bf16.msra.mxu0 %v153
  %664 = vmatpush.bf16.msra.mxu0 %v149
  %665 = vmatpush.bf16.msra.mxu0 %v145
  %666 = vmatmul.bf16.gmra.mxu0 %v618
  %v667 = vpop.f32.mrf.mxu0
  %v668 = vadd.f32 0.0, %v667
  %v669 = vpop.f32.mrf.mxu0
  %670 = vdwg.mxu0
  %s671 = scalar_lea.vmem %s0, 24
  %v672 = vld [vmem:[%s671] sm:$0xff]
  %v677 = vrot.slane %v642, 6
  %v678 = vrot.slane %v655, 4
  %v679 = vrot.slane %v668, 2
  %v680 = vsel %vm266, %v629, %v677
  %v681 = vsel %vm268, %v678, %v679
  %v682 = vsel %vm270, %v680, %v681
  %v684 = vadd.f32 %v672, %v682
  %v685 = vxor.u32 %v684, 2147483648
  %v686 = vmul.f32 %v685, 1.442695
  %v687 = vpow.pop %v686
  %v688 = vadd.f32 %v687, 1.0
  %v689 = vrcp.pop %v688
  %v690 = vmul.f32 %v688, %v689
  %v691 = vsub.f32 1.0, %v690
  %v692 = vmul.f32 %v689, %v691
  %v693 = vadd.f32 %v689, %v692
  %vm694 = vweird.f32 %v688
  %vm695 = vweird.f32 %v689
  %vm696 = vmor %vm694, %vm695
  %v697 = vsel %vm696, %v689, %v693
  %v698 = vand.u32 2147483647, %v688
  %vm699 = vcmp.eq.f32.partialorder %v698, 8.507059e+37
  %v700 = vand.u32 %v688, 2147483648
  %v701 = vor.u32 1.1754944e-38, %v700
  %v702 = vsel %vm699, %v701, %v697
  %v703 = vmul.f32 1.0, %v702
  %v705 = vrot.slane %v684, 2
  %v707 = vxor.u32 %v705, 2147483648
  %v708 = vmul.f32 %v707, 1.442695
  %v709 = vpow.pop %v708
  %v710 = vadd.f32 %v709, 1.0
  %v711 = vrcp.pop %v710
  %v712 = vmul.f32 %v710, %v711
  %v713 = vsub.f32 1.0, %v712
  %v714 = vmul.f32 %v711, %v713
  %v715 = vadd.f32 %v711, %v714
  %vm716 = vweird.f32 %v710
  %vm717 = vweird.f32 %v711
  %vm718 = vmor %vm716, %vm717
  %v719 = vsel %vm718, %v711, %v715
  %v720 = vand.u32 2147483647, %v710
  %vm721 = vcmp.eq.f32.partialorder %v720, 8.507059e+37
  %v722 = vand.u32 %v710, 2147483648
  %v723 = vor.u32 1.1754944e-38, %v722
  %v724 = vsel %vm721, %v723, %v719
  %v725 = vmul.f32 1.0, %v724
  %v726 = vrot.slane %v684, 4
  %v728 = vtanh.pop %v726
  %v729 = vrot.slane %v684, 6
  %v731 = vxor.u32 %v729, 2147483648
  %v732 = vmul.f32 %v731, 1.442695
  %v733 = vpow.pop %v732
  %v734 = vadd.f32 %v733, 1.0
  %v735 = vrcp.pop %v734
  %v736 = vmul.f32 %v734, %v735
  %v737 = vsub.f32 1.0, %v736
  %v738 = vmul.f32 %v735, %v737
  %v739 = vadd.f32 %v735, %v738
  %vm740 = vweird.f32 %v734
  %vm741 = vweird.f32 %v735
  %vm742 = vmor %vm740, %vm741
  %v743 = vsel %vm742, %v735, %v739
  %v744 = vand.u32 2147483647, %v734
  %vm745 = vcmp.eq.f32.partialorder %v744, 8.507059e+37
  %v746 = vand.u32 %v734, 2147483648
  %v747 = vor.u32 1.1754944e-38, %v746
  %v748 = vsel %vm745, %v747, %v743
  %v749 = vmul.f32 1.0, %v748
  %v750 = vmul.f32 %v725, %v615
  %v751 = vmul.f32 %v703, %v728
  %v752 = vadd.f32 %v750, %v751
  %v753 = vtanh.pop %v752
  %v754 = vmul.f32 %v749, %v753
  %v755 = vpack.c.bf16 %v754, %v754
  %756 = vmatpush.bf16.msra.mxu0 %v170
  %757 = vmatpush.bf16.msra.mxu0 %v166
  %758 = vmatpush.bf16.msra.mxu0 %v162
  %759 = vmatpush.bf16.msra.mxu0 %v158
  %760 = vmatpush.bf16.msra.mxu0 %v154
  %761 = vmatpush.bf16.msra.mxu0 %v150
  %762 = vmatpush.bf16.msra.mxu0 %v146
  %763 = vmatpush.bf16.msra.mxu0 %v142
  %764 = vmatmul.bf16.gmra.mxu0 %v755
  %v765 = vpop.f32.mrf.mxu0
  %v766 = vadd.f32 0.0, %v765
  %v767 = vpop.f32.mrf.mxu0
  %768 = vdwg.mxu0
  %769 = vmatpush.bf16.msra.mxu0 %v171
  %770 = vmatpush.bf16.msra.mxu0 %v167
  %771 = vmatpush.bf16.msra.mxu0 %v163
  %772 = vmatpush.bf16.msra.mxu0 %v159
  %773 = vmatpush.bf16.msra.mxu0 %v155
  %774 = vmatpush.bf16.msra.mxu0 %v151
  %775 = vmatpush.bf16.msra.mxu0 %v147
  %776 = vmatpush.bf16.msra.mxu0 %v143
  %777 = vmatmul.bf16.gmra.mxu0 %v755
  %v778 = vpop.f32.mrf.mxu0
  %v779 = vadd.f32 0.0, %v778
  %v780 = vpop.f32.mrf.mxu0
  %781 = vdwg.mxu0
  %782 = vmatpush.bf16.msra.mxu0 %v172
  %783 = vmatpush.bf16.msra.mxu0 %v168
  %784 = vmatpush.bf16.msra.mxu0 %v164
  %785 = vmatpush.bf16.msra.mxu0 %v160
  %786 = vmatpush.bf16.msra.mxu0 %v156
  %787 = vmatpush.bf16.msra.mxu0 %v152
  %788 = vmatpush.bf16.msra.mxu0 %v148
  %789 = vmatpush.bf16.msra.mxu0 %v144
  %790 = vmatmul.bf16.gmra.mxu0 %v755
  %v791 = vpop.f32.mrf.mxu0
  %v792 = vadd.f32 0.0, %v791
  %v793 = vpop.f32.mrf.mxu0
  %794 = vdwg.mxu0
  %795 = vmatpush.bf16.msra.mxu0 %v173
  %796 = vmatpush.bf16.msra.mxu0 %v169
  %797 = vmatpush.bf16.msra.mxu0 %v165
  %798 = vmatpush.bf16.msra.mxu0 %v161
  %799 = vmatpush.bf16.msra.mxu0 %v157
  %800 = vmatpush.bf16.msra.mxu0 %v153
  %801 = vmatpush.bf16.msra.mxu0 %v149
  %802 = vmatpush.bf16.msra.mxu0 %v145
  %803 = vmatmul.bf16.gmra.mxu0 %v755
  %v804 = vpop.f32.mrf.mxu0
  %v805 = vadd.f32 0.0, %v804
  %v806 = vpop.f32.mrf.mxu0
  %807 = vdwg.mxu0
  %s808 = scalar_lea.vmem %s0, 32
  %v809 = vld [vmem:[%s808] sm:$0xff]
  %v814 = vrot.slane %v779, 6
  %v815 = vrot.slane %v792, 4
  %v816 = vrot.slane %v805, 2
  %v817 = vsel %vm266, %v766, %v814
  %v818 = vsel %vm268, %v815, %v816
  %v819 = vsel %vm270, %v817, %v818
  %v821 = vadd.f32 %v809, %v819
  %v822 = vxor.u32 %v821, 2147483648
  %v823 = vmul.f32 %v822, 1.442695
  %v824 = vpow.pop %v823
  %v825 = vadd.f32 %v824, 1.0
  %v826 = vrcp.pop %v825
  %v827 = vmul.f32 %v825, %v826
  %v828 = vsub.f32 1.0, %v827
  %v829 = vmul.f32 %v826, %v828
  %v830 = vadd.f32 %v826, %v829
  %vm831 = vweird.f32 %v825
  %vm832 = vweird.f32 %v826
  %vm833 = vmor %vm831, %vm832
  %v834 = vsel %vm833, %v826, %v830
  %v835 = vand.u32 2147483647, %v825
  %vm836 = vcmp.eq.f32.partialorder %v835, 8.507059e+37
  %v837 = vand.u32 %v825, 2147483648
  %v838 = vor.u32 1.1754944e-38, %v837
  %v839 = vsel %vm836, %v838, %v834
  %v840 = vmul.f32 1.0, %v839
  %v842 = vrot.slane %v821, 2
  %v844 = vxor.u32 %v842, 2147483648
  %v845 = vmul.f32 %v844, 1.442695
  %v846 = vpow.pop %v845
  %v847 = vadd.f32 %v846, 1.0
  %v848 = vrcp.pop %v847
  %v849 = vmul.f32 %v847, %v848
  %v850 = vsub.f32 1.0, %v849
  %v851 = vmul.f32 %v848, %v850
  %v852 = vadd.f32 %v848, %v851
  %vm853 = vweird.f32 %v847
  %vm854 = vweird.f32 %v848
  %vm855 = vmor %vm853, %vm854
  %v856 = vsel %vm855, %v848, %v852
  %v857 = vand.u32 2147483647, %v847
  %vm858 = vcmp.eq.f32.partialorder %v857, 8.507059e+37
  %v859 = vand.u32 %v847, 2147483648
  %v860 = vor.u32 1.1754944e-38, %v859
  %v861 = vsel %vm858, %v860, %v856
  %v862 = vmul.f32 1.0, %v861
  %v863 = vrot.slane %v821, 4
  %v865 = vtanh.pop %v863
  %v866 = vrot.slane %v821, 6
  %v868 = vxor.u32 %v866, 2147483648
  %v869 = vmul.f32 %v868, 1.442695
  %v870 = vpow.pop %v869
  %v871 = vadd.f32 %v870, 1.0
  %v872 = vrcp.pop %v871
  %v873 = vmul.f32 %v871, %v872
  %v874 = vsub.f32 1.0, %v873
  %v875 = vmul.f32 %v872, %v874
  %v876 = vadd.f32 %v872, %v875
  %vm877 = vweird.f32 %v871
  %vm878 = vweird.f32 %v872
  %vm879 = vmor %vm877, %vm878
  %v880 = vsel %vm879, %v872, %v876
  %v881 = vand.u32 2147483647, %v871
  %vm882 = vcmp.eq.f32.partialorder %v881, 8.507059e+37
  %v883 = vand.u32 %v871, 2147483648
  %v884 = vor.u32 1.1754944e-38, %v883
  %v885 = vsel %vm882, %v884, %v880
  %v886 = vmul.f32 1.0, %v885
  %v887 = vmul.f32 %v862, %v752
  %v888 = vmul.f32 %v840, %v865
  %v889 = vadd.f32 %v887, %v888
  %v890 = vtanh.pop %v889
  %v891 = vmul.f32 %v886, %v890
  %v892 = vpack.c.bf16 %v891, %v891
  %893 = vmatpush.bf16.msra.mxu0 %v170
  %894 = vmatpush.bf16.msra.mxu0 %v166
  %895 = vmatpush.bf16.msra.mxu0 %v162
  %896 = vmatpush.bf16.msra.mxu0 %v158
  %897 = vmatpush.bf16.msra.mxu0 %v154
  %898 = vmatpush.bf16.msra.mxu0 %v150
  %899 = vmatpush.bf16.msra.mxu0 %v146
  %900 = vmatpush.bf16.msra.mxu0 %v142
  %901 = vmatmul.bf16.gmra.mxu0 %v892
  %v902 = vpop.f32.mrf.mxu0
  %v903 = vadd.f32 0.0, %v902
  %v904 = vpop.f32.mrf.mxu0
  %905 = vdwg.mxu0
  %906 = vmatpush.bf16.msra.mxu0 %v171
  %907 = vmatpush.bf16.msra.mxu0 %v167
  %908 = vmatpush.bf16.msra.mxu0 %v163
  %909 = vmatpush.bf16.msra.mxu0 %v159
  %910 = vmatpush.bf16.msra.mxu0 %v155
  %911 = vmatpush.bf16.msra.mxu0 %v151
  %912 = vmatpush.bf16.msra.mxu0 %v147
  %913 = vmatpush.bf16.msra.mxu0 %v143
  %914 = vmatmul.bf16.gmra.mxu0 %v892
  %v915 = vpop.f32.mrf.mxu0
  %v916 = vadd.f32 0.0, %v915
  %v917 = vpop.f32.mrf.mxu0
  %918 = vdwg.mxu0
  %919 = vmatpush.bf16.msra.mxu0 %v172
  %920 = vmatpush.bf16.msra.mxu0 %v168
  %921 = vmatpush.bf16.msra.mxu0 %v164
  %922 = vmatpush.bf16.msra.mxu0 %v160
  %923 = vmatpush.bf16.msra.mxu0 %v156
  %924 = vmatpush.bf16.msra.mxu0 %v152
  %925 = vmatpush.bf16.msra.mxu0 %v148
  %926 = vmatpush.bf16.msra.mxu0 %v144
  %927 = vmatmul.bf16.gmra.mxu0 %v892
  %v928 = vpop.f32.mrf.mxu0
  %v929 = vadd.f32 0.0, %v928
  %v930 = vpop.f32.mrf.mxu0
  %931 = vdwg.mxu0
  %932 = vmatpush.bf16.msra.mxu0 %v173
  %933 = vmatpush.bf16.msra.mxu0 %v169
  %934 = vmatpush.bf16.msra.mxu0 %v165
  %935 = vmatpush.bf16.msra.mxu0 %v161
  %936 = vmatpush.bf16.msra.mxu0 %v157
  %937 = vmatpush.bf16.msra.mxu0 %v153
  %938 = vmatpush.bf16.msra.mxu0 %v149
  %939 = vmatpush.bf16.msra.mxu0 %v145
  %940 = vmatmul.bf16.gmra.mxu0 %v892
  %v941 = vpop.f32.mrf.mxu0
  %v942 = vadd.f32 0.0, %v941
  %v943 = vpop.f32.mrf.mxu0
  %944 = vdwg.mxu0
  %s945 = scalar_lea.vmem %s0, 40
  %v946 = vld [vmem:[%s945] sm:$0xff]
  %v951 = vrot.slane %v916, 6
  %v952 = vrot.slane %v929, 4
  %v953 = vrot.slane %v942, 2
  %v954 = vsel %vm266, %v903, %v951
  %v955 = vsel %vm268, %v952, %v953
  %v956 = vsel %vm270, %v954, %v955
  %v958 = vadd.f32 %v946, %v956
  %v959 = vxor.u32 %v958, 2147483648
  %v960 = vmul.f32 %v959, 1.442695
  %v961 = vpow.pop %v960
  %v962 = vadd.f32 %v961, 1.0
  %v963 = vrcp.pop %v962
  %v964 = vmul.f32 %v962, %v963
  %v965 = vsub.f32 1.0, %v964
  %v966 = vmul.f32 %v963, %v965
  %v967 = vadd.f32 %v963, %v966
  %vm968 = vweird.f32 %v962
  %vm969 = vweird.f32 %v963
  %vm970 = vmor %vm968, %vm969
  %v971 = vsel %vm970, %v963, %v967
  %v972 = vand.u32 2147483647, %v962
  %vm973 = vcmp.eq.f32.partialorder %v972, 8.507059e+37
  %v974 = vand.u32 %v962, 2147483648
  %v975 = vor.u32 1.1754944e-38, %v974
  %v976 = vsel %vm973, %v975, %v971
  %v977 = vmul.f32 1.0, %v976
  %v979 = vrot.slane %v958, 2
  %v981 = vxor.u32 %v979, 2147483648
  %v982 = vmul.f32 %v981, 1.442695
  %v983 = vpow.pop %v982
  %v984 = vadd.f32 %v983, 1.0
  %v985 = vrcp.pop %v984
  %v986 = vmul.f32 %v984, %v985
  %v987 = vsub.f32 1.0, %v986
  %v988 = vmul.f32 %v985, %v987
  %v989 = vadd.f32 %v985, %v988
  %vm990 = vweird.f32 %v984
  %vm991 = vweird.f32 %v985
  %vm992 = vmor %vm990, %vm991
  %v993 = vsel %vm992, %v985, %v989
  %v994 = vand.u32 2147483647, %v984
  %vm995 = vcmp.eq.f32.partialorder %v994, 8.507059e+37
  %v996 = vand.u32 %v984, 2147483648
  %v997 = vor.u32 1.1754944e-38, %v996
  %v998 = vsel %vm995, %v997, %v993
  %v999 = vmul.f32 1.0, %v998
  %v1000 = vrot.slane %v958, 4
  %v1002 = vtanh.pop %v1000
  %v1003 = vrot.slane %v958, 6
  %v1005 = vxor.u32 %v1003, 2147483648
  %v1006 = vmul.f32 %v1005, 1.442695
  %v1007 = vpow.pop %v1006
  %v1008 = vadd.f32 %v1007, 1.0
  %v1009 = vrcp.pop %v1008
  %v1010 = vmul.f32 %v1008, %v1009
  %v1011 = vsub.f32 1.0, %v1010
  %v1012 = vmul.f32 %v1009, %v1011
  %v1013 = vadd.f32 %v1009, %v1012
  %vm1014 = vweird.f32 %v1008
  %vm1015 = vweird.f32 %v1009
  %vm1016 = vmor %vm1014, %vm1015
  %v1017 = vsel %vm1016, %v1009, %v1013
  %v1018 = vand.u32 2147483647, %v1008
  %vm1019 = vcmp.eq.f32.partialorder %v1018, 8.507059e+37
  %v1020 = vand.u32 %v1008, 2147483648
  %v1021 = vor.u32 1.1754944e-38, %v1020
  %v1022 = vsel %vm1019, %v1021, %v1017
  %v1023 = vmul.f32 1.0, %v1022
  %v1024 = vmul.f32 %v999, %v889
  %v1025 = vmul.f32 %v977, %v1002
  %v1026 = vadd.f32 %v1024, %v1025
  %v1027 = vtanh.pop %v1026
  %v1028 = vmul.f32 %v1023, %v1027
  %v1029 = vpack.c.bf16 %v1028, %v1028
  %1030 = vmatpush.bf16.msra.mxu0 %v170
  %1031 = vmatpush.bf16.msra.mxu0 %v166
  %1032 = vmatpush.bf16.msra.mxu0 %v162
  %1033 = vmatpush.bf16.msra.mxu0 %v158
  %1034 = vmatpush.bf16.msra.mxu0 %v154
  %1035 = vmatpush.bf16.msra.mxu0 %v150
  %1036 = vmatpush.bf16.msra.mxu0 %v146
  %1037 = vmatpush.bf16.msra.mxu0 %v142
  %1038 = vmatmul.bf16.gmra.mxu0 %v1029
  %v1039 = vpop.f32.mrf.mxu0
  %v1040 = vadd.f32 0.0, %v1039
  %v1041 = vpop.f32.mrf.mxu0
  %1042 = vdwg.mxu0
  %1043 = vmatpush.bf16.msra.mxu0 %v171
  %1044 = vmatpush.bf16.msra.mxu0 %v167
  %1045 = vmatpush.bf16.msra.mxu0 %v163
  %1046 = vmatpush.bf16.msra.mxu0 %v159
  %1047 = vmatpush.bf16.msra.mxu0 %v155
  %1048 = vmatpush.bf16.msra.mxu0 %v151
  %1049 = vmatpush.bf16.msra.mxu0 %v147
  %1050 = vmatpush.bf16.msra.mxu0 %v143
  %1051 = vmatmul.bf16.gmra.mxu0 %v1029
  %v1052 = vpop.f32.mrf.mxu0
  %v1053 = vadd.f32 0.0, %v1052
  %v1054 = vpop.f32.mrf.mxu0
  %1055 = vdwg.mxu0
  %1056 = vmatpush.bf16.msra.mxu0 %v172
  %1057 = vmatpush.bf16.msra.mxu0 %v168
  %1058 = vmatpush.bf16.msra.mxu0 %v164
  %1059 = vmatpush.bf16.msra.mxu0 %v160
  %1060 = vmatpush.bf16.msra.mxu0 %v156
  %1061 = vmatpush.bf16.msra.mxu0 %v152
  %1062 = vmatpush.bf16.msra.mxu0 %v148
  %1063 = vmatpush.bf16.msra.mxu0 %v144
  %1064 = vmatmul.bf16.gmra.mxu0 %v1029
  %v1065 = vpop.f32.mrf.mxu0
  %v1066 = vadd.f32 0.0, %v1065
  %v1067 = vpop.f32.mrf.mxu0
  %1068 = vdwg.mxu0
  %1069 = vmatpush.bf16.msra.mxu0 %v173
  %1070 = vmatpush.bf16.msra.mxu0 %v169
  %1071 = vmatpush.bf16.msra.mxu0 %v165
  %1072 = vmatpush.bf16.msra.mxu0 %v161
  %1073 = vmatpush.bf16.msra.mxu0 %v157
  %1074 = vmatpush.bf16.msra.mxu0 %v153
  %1075 = vmatpush.bf16.msra.mxu0 %v149
  %1076 = vmatpush.bf16.msra.mxu0 %v145
  %1077 = vmatmul.bf16.gmra.mxu0 %v1029
  %v1078 = vpop.f32.mrf.mxu0
  %v1079 = vadd.f32 0.0, %v1078
  %v1080 = vpop.f32.mrf.mxu0
  %1081 = vdwg.mxu0
  %s1082 = scalar_lea.vmem %s0, 48
  %v1083 = vld [vmem:[%s1082] sm:$0xff]
  %v1088 = vrot.slane %v1053, 6
  %v1089 = vrot.slane %v1066, 4
  %v1090 = vrot.slane %v1079, 2
  %v1091 = vsel %vm266, %v1040, %v1088
  %v1092 = vsel %vm268, %v1089, %v1090
  %v1093 = vsel %vm270, %v1091, %v1092
  %v1095 = vadd.f32 %v1083, %v1093
  %v1096 = vxor.u32 %v1095, 2147483648
  %v1097 = vmul.f32 %v1096, 1.442695
  %v1098 = vpow.pop %v1097
  %v1099 = vadd.f32 %v1098, 1.0
  %v1100 = vrcp.pop %v1099
  %v1101 = vmul.f32 %v1099, %v1100
  %v1102 = vsub.f32 1.0, %v1101
  %v1103 = vmul.f32 %v1100, %v1102
  %v1104 = vadd.f32 %v1100, %v1103
  %vm1105 = vweird.f32 %v1099
  %vm1106 = vweird.f32 %v1100
  %vm1107 = vmor %vm1105, %vm1106
  %v1108 = vsel %vm1107, %v1100, %v1104
  %v1109 = vand.u32 2147483647, %v1099
  %vm1110 = vcmp.eq.f32.partialorder %v1109, 8.507059e+37
  %v1111 = vand.u32 %v1099, 2147483648
  %v1112 = vor.u32 1.1754944e-38, %v1111
  %v1113 = vsel %vm1110, %v1112, %v1108
  %v1114 = vmul.f32 1.0, %v1113
  %v1116 = vrot.slane %v1095, 2
  %v1118 = vxor.u32 %v1116, 2147483648
  %v1119 = vmul.f32 %v1118, 1.442695
  %v1120 = vpow.pop %v1119
  %v1121 = vadd.f32 %v1120, 1.0
  %v1122 = vrcp.pop %v1121
  %v1123 = vmul.f32 %v1121, %v1122
  %v1124 = vsub.f32 1.0, %v1123
  %v1125 = vmul.f32 %v1122, %v1124
  %v1126 = vadd.f32 %v1122, %v1125
  %vm1127 = vweird.f32 %v1121
  %vm1128 = vweird.f32 %v1122
  %vm1129 = vmor %vm1127, %vm1128
  %v1130 = vsel %vm1129, %v1122, %v1126
  %v1131 = vand.u32 2147483647, %v1121
  %vm1132 = vcmp.eq.f32.partialorder %v1131, 8.507059e+37
  %v1133 = vand.u32 %v1121, 2147483648
  %v1134 = vor.u32 1.1754944e-38, %v1133
  %v1135 = vsel %vm1132, %v1134, %v1130
  %v1136 = vmul.f32 1.0, %v1135
  %v1137 = vrot.slane %v1095, 4
  %v1139 = vtanh.pop %v1137
  %v1140 = vrot.slane %v1095, 6
  %v1142 = vxor.u32 %v1140, 2147483648
  %v1143 = vmul.f32 %v1142, 1.442695
  %v1144 = vpow.pop %v1143
  %v1145 = vadd.f32 %v1144, 1.0
  %v1146 = vrcp.pop %v1145
  %v1147 = vmul.f32 %v1145, %v1146
  %v1148 = vsub.f32 1.0, %v1147
  %v1149 = vmul.f32 %v1146, %v1148
  %v1150 = vadd.f32 %v1146, %v1149
  %vm1151 = vweird.f32 %v1145
  %vm1152 = vweird.f32 %v1146
  %vm1153 = vmor %vm1151, %vm1152
  %v1154 = vsel %vm1153, %v1146, %v1150
  %v1155 = vand.u32 2147483647, %v1145
  %vm1156 = vcmp.eq.f32.partialorder %v1155, 8.507059e+37
  %v1157 = vand.u32 %v1145, 2147483648
  %v1158 = vor.u32 1.1754944e-38, %v1157
  %v1159 = vsel %vm1156, %v1158, %v1154
  %v1160 = vmul.f32 1.0, %v1159
  %v1161 = vmul.f32 %v1136, %v1026
  %v1162 = vmul.f32 %v1114, %v1139
  %v1163 = vadd.f32 %v1161, %v1162
  %v1164 = vtanh.pop %v1163
  %v1165 = vmul.f32 %v1160, %v1164
  %v1166 = vpack.c.bf16 %v1165, %v1165
  %1167 = vmatpush.bf16.msra.mxu0 %v170
  %1168 = vmatpush.bf16.msra.mxu0 %v166
  %1169 = vmatpush.bf16.msra.mxu0 %v162
  %1170 = vmatpush.bf16.msra.mxu0 %v158
  %1171 = vmatpush.bf16.msra.mxu0 %v154
  %1172 = vmatpush.bf16.msra.mxu0 %v150
  %1173 = vmatpush.bf16.msra.mxu0 %v146
  %1174 = vmatpush.bf16.msra.mxu0 %v142
  %1175 = vmatmul.bf16.gmra.mxu0 %v1166
  %v1176 = vpop.f32.mrf.mxu0
  %v1177 = vadd.f32 0.0, %v1176
  %v1178 = vpop.f32.mrf.mxu0
  %1179 = vdwg.mxu0
  %1180 = vmatpush.bf16.msra.mxu0 %v171
  %1181 = vmatpush.bf16.msra.mxu0 %v167
  %1182 = vmatpush.bf16.msra.mxu0 %v163
  %1183 = vmatpush.bf16.msra.mxu0 %v159
  %1184 = vmatpush.bf16.msra.mxu0 %v155
  %1185 = vmatpush.bf16.msra.mxu0 %v151
  %1186 = vmatpush.bf16.msra.mxu0 %v147
  %1187 = vmatpush.bf16.msra.mxu0 %v143
  %1188 = vmatmul.bf16.gmra.mxu0 %v1166
  %v1189 = vpop.f32.mrf.mxu0
  %v1190 = vadd.f32 0.0, %v1189
  %v1191 = vpop.f32.mrf.mxu0
  %1192 = vdwg.mxu0
  %1193 = vmatpush.bf16.msra.mxu0 %v172
  %1194 = vmatpush.bf16.msra.mxu0 %v168
  %1195 = vmatpush.bf16.msra.mxu0 %v164
  %1196 = vmatpush.bf16.msra.mxu0 %v160
  %1197 = vmatpush.bf16.msra.mxu0 %v156
  %1198 = vmatpush.bf16.msra.mxu0 %v152
  %1199 = vmatpush.bf16.msra.mxu0 %v148
  %1200 = vmatpush.bf16.msra.mxu0 %v144
  %1201 = vmatmul.bf16.gmra.mxu0 %v1166
  %v1202 = vpop.f32.mrf.mxu0
  %v1203 = vadd.f32 0.0, %v1202
  %v1204 = vpop.f32.mrf.mxu0
  %1205 = vdwg.mxu0
  %1206 = vmatpush.bf16.msra.mxu0 %v173
  %1207 = vmatpush.bf16.msra.mxu0 %v169
  %1208 = vmatpush.bf16.msra.mxu0 %v165
  %1209 = vmatpush.bf16.msra.mxu0 %v161
  %1210 = vmatpush.bf16.msra.mxu0 %v157
  %1211 = vmatpush.bf16.msra.mxu0 %v153
  %1212 = vmatpush.bf16.msra.mxu0 %v149
  %1213 = vmatpush.bf16.msra.mxu0 %v145
  %1214 = vmatmul.bf16.gmra.mxu0 %v1166
  %v1215 = vpop.f32.mrf.mxu0
  %v1216 = vadd.f32 0.0, %v1215
  %v1217 = vpop.f32.mrf.mxu0
  %1218 = vdwg.mxu0
  %s1219 = scalar_lea.vmem %s0, 56
  %v1220 = vld [vmem:[%s1219] sm:$0xff]
  %v1225 = vrot.slane %v1190, 6
  %v1226 = vrot.slane %v1203, 4
  %v1227 = vrot.slane %v1216, 2
  %v1228 = vsel %vm266, %v1177, %v1225
  %v1229 = vsel %vm268, %v1226, %v1227
  %v1230 = vsel %vm270, %v1228, %v1229
  %v1232 = vadd.f32 %v1220, %v1230
  %v1233 = vxor.u32 %v1232, 2147483648
  %v1234 = vmul.f32 %v1233, 1.442695
  %v1235 = vpow.pop %v1234
  %v1236 = vadd.f32 %v1235, 1.0
  %v1237 = vrcp.pop %v1236
  %v1238 = vmul.f32 %v1236, %v1237
  %v1239 = vsub.f32 1.0, %v1238
  %v1240 = vmul.f32 %v1237, %v1239
  %v1241 = vadd.f32 %v1237, %v1240
  %vm1242 = vweird.f32 %v1236
  %vm1243 = vweird.f32 %v1237
  %vm1244 = vmor %vm1242, %vm1243
  %v1245 = vsel %vm1244, %v1237, %v1241
  %v1246 = vand.u32 2147483647, %v1236
  %vm1247 = vcmp.eq.f32.partialorder %v1246, 8.507059e+37
  %v1248 = vand.u32 %v1236, 2147483648
  %v1249 = vor.u32 1.1754944e-38, %v1248
  %v1250 = vsel %vm1247, %v1249, %v1245
  %v1251 = vmul.f32 1.0, %v1250
  %v1253 = vrot.slane %v1232, 2
  %v1255 = vxor.u32 %v1253, 2147483648
  %v1256 = vmul.f32 %v1255, 1.442695
  %v1257 = vpow.pop %v1256
  %v1258 = vadd.f32 %v1257, 1.0
  %v1259 = vrcp.pop %v1258
  %v1260 = vmul.f32 %v1258, %v1259
  %v1261 = vsub.f32 1.0, %v1260
  %v1262 = vmul.f32 %v1259, %v1261
  %v1263 = vadd.f32 %v1259, %v1262
  %vm1264 = vweird.f32 %v1258
  %vm1265 = vweird.f32 %v1259
  %vm1266 = vmor %vm1264, %vm1265
  %v1267 = vsel %vm1266, %v1259, %v1263
  %v1268 = vand.u32 2147483647, %v1258
  %vm1269 = vcmp.eq.f32.partialorder %v1268, 8.507059e+37
  %v1270 = vand.u32 %v1258, 2147483648
  %v1271 = vor.u32 1.1754944e-38, %v1270
  %v1272 = vsel %vm1269, %v1271, %v1267
  %v1273 = vmul.f32 1.0, %v1272
  %v1274 = vrot.slane %v1232, 4
  %v1276 = vtanh.pop %v1274
  %v1277 = vrot.slane %v1232, 6
  %v1279 = vxor.u32 %v1277, 2147483648
  %v1280 = vmul.f32 %v1279, 1.442695
  %v1281 = vpow.pop %v1280
  %v1282 = vadd.f32 %v1281, 1.0
  %v1283 = vrcp.pop %v1282
  %v1284 = vmul.f32 %v1282, %v1283
  %v1285 = vsub.f32 1.0, %v1284
  %v1286 = vmul.f32 %v1283, %v1285
  %v1287 = vadd.f32 %v1283, %v1286
  %vm1288 = vweird.f32 %v1282
  %vm1289 = vweird.f32 %v1283
  %vm1290 = vmor %vm1288, %vm1289
  %v1291 = vsel %vm1290, %v1283, %v1287
  %v1292 = vand.u32 2147483647, %v1282
  %vm1293 = vcmp.eq.f32.partialorder %v1292, 8.507059e+37
  %v1294 = vand.u32 %v1282, 2147483648
  %v1295 = vor.u32 1.1754944e-38, %v1294
  %v1296 = vsel %vm1293, %v1295, %v1291
  %v1297 = vmul.f32 1.0, %v1296
  %v1298 = vmul.f32 %v1273, %v1163
  %v1299 = vmul.f32 %v1251, %v1276
  %v1300 = vadd.f32 %v1298, %v1299
  %v1301 = vtanh.pop %v1300
  %v1302 = vmul.f32 %v1297, %v1301
  %1303 = vst [vmem:[%s2] sm:$0x3] %v1302
  %1304 = vst [vmem:[%s3] sm:$0x3] %v1300
  // Predicated region
  $region10: #{encoder_forward.1} parent=0 // pred_check
    _
  $region11: #{encoder_forward.1} parent=0 // pred_check_branch
    %1306 = sbr.rel (0) target = $region13
  $region12: #{encoder_forward.1} parent=0 // pred_region
    _
  $region13: #{encoder_forward.1} parent=0 // pred_fallthru
    _
  // Predicated region
  $region14: #{encoder_forward.1} parent=0 // pred_check
    _
  $region15: #{encoder_forward.1} parent=0 // pred_check_branch
    %1308 = sbr.rel (0) target = $region17
  $region16: #{encoder_forward.1} parent=0 // pred_region
    _
  $region17: #{encoder_forward.1} parent=0 // pred_fallthru
    _
  // Predicated region
  $region18: #{encoder_forward.1} parent=0 // pred_check
    _
  $region19: #{encoder_forward.1} parent=0 // pred_check_branch
    %1310 = sbr.rel (0) target = $region21
  $region20: #{encoder_forward.1} parent=0 // pred_region
    _
  $region21: #{encoder_forward.1} parent=0 // pred_fallthru
    _
  // Predicated region
  $region22: #{encoder_forward.1} parent=0 // pred_check
    _
  $region23: #{encoder_forward.1} parent=0 // pred_check_branch
    %1312 = sbr.rel (0) target = $region25
  $region24: #{encoder_forward.1} parent=0 // pred_region
    _
  $region25: #{encoder_forward.1} parent=0 // pred_fallthru
    _

</llo_original>
